<compile_context>
chip_gen: v7x
topology: tpu7x:2x2x1
jax: 0.10.0
libtpu: 0.0.40
codegen_flags: <defaults>
</compile_context>

<pallas_src>
import functools

import jax
import jax.numpy as jnp
from jax.experimental import pallas as pl
from jax.experimental.pallas import tpu as pltpu


# ----------------------------- Pallas kernel --------------------------------
def _fused_controller_kernel(x_ref, h0_ref, c0_ref,
                             w_lstm_ref, b_lstm_ref, w_dec_ref,
                             logits_ref, hx_out_ref, cx_out_ref,
                             xh_sc,
                             *, hid, num_steps, tanh_c, train_mode):
    H = hid
    # Whole-rollout-resident weights (loaded once).
    w_lstm = w_lstm_ref[...]          # (2H, 4H)  [W_ih^T ; W_hh^T], g-cols pre-scaled by 2
    b_lstm = b_lstm_ref[...]          # (1, 4H)   b_ih + b_hh, g-cols pre-scaled by 2
    w_dec = w_dec_ref[...]            # (H, TP)   concat decoders, pre-scaled by 1/T

    # [x, hx] slab: lanes [0:H] = x_t, lanes [H:2H] = h_{t-1}.  No per-step lane concat.
    xh_sc[:, H:2 * H] = h0_ref[...]
    cx = c0_ref[...]
    hx = h0_ref[...]

    # Fully-unrolled in-kernel recurrence: one kernel invocation for all steps,
    # hidden state never leaves vregs/VMEM.
    for i in range(num_steps):
        xh_sc[:, 0:H] = x_ref[i]
        gates = (jnp.dot(xh_sc[...], w_lstm,
                         preferred_element_type=jnp.float32) + b_lstm)      # (B, 4H)

        # One full-width tanh (single EUP pass).  sigmoid(x) = 0.5*tanh(x/2) + 0.5
        # (VPU fma).  The g-columns were pre-scaled by 2 so tanh(0.5*gates) gives
        # tanh(g) directly for the cell candidate.
        t = jnp.tanh(0.5 * gates)
        sig = 0.5 * t + 0.5
        i_g = sig[:, 0 * H:1 * H]      # input gate
        f_g = sig[:, 1 * H:2 * H]      # forget gate
        g_g = t[:, 2 * H:3 * H]        # cell candidate
        o_g = sig[:, 3 * H:4 * H]      # output gate

        cx = f_g * cx + i_g * g_g
        hx = o_g * jnp.tanh(cx)

        # All decoder heads at once; lane-dense resident logits slab.
        # (decoder biases are zero by construction; if nonzero biases are ever
        #  loaded, add them back here pre-scaled by 1/softmax_temperature)
        logits = jnp.dot(hx, w_dec, preferred_element_type=jnp.float32)
        if train_mode:
            logits = tanh_c * jnp.tanh(logits)
        logits_ref[i] = logits

        xh_sc[:, H:2 * H] = hx         # feed next step's LSTM matmul

    # Final hidden state written exactly once.
    hx_out_ref[...] = hx
    cx_out_ref[...] = cx


# ------------------------------ Python wrapper -------------------------------
class SimpleNASControllerPallas:
    def __init__(self, search_space, action_list, controller_hid=32,
                 mode='train', softmax_temperature=5.0, tanh_c=2.5, seed=0):
        assert all(a in search_space for a in action_list)
        self.search_space = search_space
        self.action_list = action_list
        self.controller_hid = controller_hid
        self.mode = mode
        self.softmax_temperature = float(softmax_temperature)
        self.tanh_c = float(tanh_c)

        self.num_tokens = [len(search_space[k]) for k in search_space]
        total = sum(self.num_tokens)
        self.total_tokens = total
        self.total_pad = max(128, -(-total // 128) * 128)   # lane-dense logits slab
        H = controller_hid
        init_range = 0.1

        key = jax.random.PRNGKey(seed)
        ks = jax.random.split(key, 6 + len(search_space))
        u = lambda k, shape: jax.random.uniform(k, shape, jnp.float32,
                                                -init_range, init_range)

        # NOTE: the nn.Embedding ("encoder") is never read by forward(); not allocated.
        # TODO(synk): encoder embedding lookup + multinomial sampling (sample()) not
        # implemented here; only the forward() math is kernelized.

        # LSTMCell parameters, stacked transposed as [2H, 4H]: rows [0:H] = W_ih^T,
        # rows [H:2H] = W_hh^T.  Bias folded: b_ih + b_hh, shape (1, 4H).
        w_ih_t = u(ks[1], (H, 4 * H))
        w_hh_t = u(ks[2], (H, 4 * H))
        b_ih = u(ks[3], (4 * H,))
        b_hh = u(ks[4], (4 * H,))
        self.w_lstm = jnp.concatenate([w_ih_t, w_hh_t], axis=0)      # (2H, 4H) reference
        self.b_lstm = (b_ih + b_hh).reshape(1, 4 * H)

        # Kernel-side LSTM params: candidate-gate (g) columns pre-scaled by 2 so the
        # kernel needs only one tanh pass over the gates vreg.
        gscale = jnp.ones((4 * H,), jnp.float32).at[2 * H:3 * H].set(2.0)
        self.w_lstm_k = self.w_lstm * gscale[None, :]
        self.b_lstm_k = self.b_lstm * gscale[None, :]

        # Per-action decoders (Linear(H, size), bias zero per reset_parameters).
        # Unscaled copies kept for the pure-JAX reference; concatenated + pre-scaled
        # by 1/softmax_temperature for the kernel.  The decoder bias is dropped from
        # the kernel entirely while biases are guaranteed zero.
        self.offsets = {}
        self.sizes = {}
        self._decoders_ref = {}
        w_dec_cat = jnp.zeros((H, self.total_pad), jnp.float32)
        off = 0
        inv_temp = 1.0 / self.softmax_temperature
        for i, key_name in enumerate(search_space):
            size = len(search_space[key_name])
            w = u(ks[5 + i], (H, size))
            b = jnp.zeros((1, size), jnp.float32)
            self._decoders_ref[key_name] = (w, b)
            self.offsets[key_name] = off
            self.sizes[key_name] = size
            w_dec_cat = w_dec_cat.at[:, off:off + size].set(w * inv_temp)
            off += size
        self.w_dec_cat = w_dec_cat                                   # (H, 128)

        self._calls = {}   # (num_steps, batch, mode) -> jitted fused pallas_call

    # ----- build / cache the fused pallas_call for a given step count & batch -----
    def _get_call(self, num_steps, B):
        cache_key = (num_steps, B, self.mode)
        if cache_key in self._calls:
            return self._calls[cache_key]

        H = self.controller_hid
        TP = self.total_pad
        kernel = functools.partial(
            _fused_controller_kernel,
            hid=H,
            num_steps=num_steps,
            tanh_c=self.tanh_c,
            train_mode=(self.mode == 'train'),
        )
        const2 = lambda i: (0, 0)
        const3 = lambda i: (0, 0, 0)
        call = pl.pallas_call(
            kernel,
            grid=(1,),                                   # single invocation; loop is in-kernel
            in_specs=[
                pl.BlockSpec((num_steps, B, H), const3),  # whole inputs_seq (VMEM resident)
                pl.BlockSpec((B, H), const2),             # h0
                pl.BlockSpec((B, H), const2),             # c0
                pl.BlockSpec((2 * H, 4 * H), const2),     # stacked LSTM weight (g-scaled)
                pl.BlockSpec((1, 4 * H), const2),         # LSTM bias (g-scaled)
                pl.BlockSpec((H, TP), const2),            # concat decoder weight (1/T folded)
            ],
            out_specs=(
                pl.BlockSpec((num_steps, B, TP), const3),  # resident logits slab
                pl.BlockSpec((B, H), const2),              # final hx
                pl.BlockSpec((B, H), const2),              # final cx
            ),
            out_shape=(
                jax.ShapeDtypeStruct((num_steps, B, TP), jnp.float32),
                jax.ShapeDtypeStruct((B, H), jnp.float32),
                jax.ShapeDtypeStruct((B, H), jnp.float32),
            ),
            scratch_shapes=[pltpu.VMEM((B, 2 * H), jnp.float32)],   # [x, hx] slab
            compiler_params=pltpu.CompilerParams(
                dimension_semantics=("arbitrary",)),
        )
        jitted = jax.jit(call)
        self._calls[cache_key] = jitted
        return jitted

    # ----- module-parity single-step forward -----
    def forward(self, inputs, hidden, action_name, is_embed=False):
        hx, cx = hidden
        B = inputs.shape[0]
        call = self._get_call(1, B)
        logits_all, hx_new, cx_new = call(
            inputs[None, :, :], hx, cx,
            self.w_lstm_k, self.b_lstm_k, self.w_dec_cat)
        off = self.offsets[action_name]
        size = self.sizes[action_name]
        return logits_all[0, :, off:off + size], (hx_new, cx_new)

    # ----- fused multi-step forward: whole action_list in ONE pallas_call -----
    def forward_all(self, inputs_seq, hidden, action_names=None):
        if action_names is None:
            action_names = self.action_list
        num_steps, B = inputs_seq.shape[0], inputs_seq.shape[1]
        assert num_steps == len(action_names)
        call = self._get_call(num_steps, B)
        logits_all, hx_new, cx_new = call(
            inputs_seq, hidden[0], hidden[1],
            self.w_lstm_k, self.b_lstm_k, self.w_dec_cat)
        logits_list = [
            logits_all[i, :, self.offsets[a]:self.offsets[a] + self.sizes[a]]
            for i, a in enumerate(action_names)
        ]
        return logits_list, (hx_new, cx_new)

    def init_hidden(self, batch_size):
        z = jnp.zeros((batch_size, self.controller_hid), jnp.float32)
        return (z, z)

    # ---------------- pure-JAX reference (for correctness check) ----------------
    def forward_ref(self, inputs, hidden, action_name):
        hx, cx = hidden
        H = self.controller_hid
        gates = (inputs @ self.w_lstm[:H] + hx @ self.w_lstm[H:] + self.b_lstm)
        i_g = jax.nn.sigmoid(gates[:, 0 * H:1 * H])
        f_g = jax.nn.sigmoid(gates[:, 1 * H:2 * H])
        g_g = jnp.tanh(gates[:, 2 * H:3 * H])
        o_g = jax.nn.sigmoid(gates[:, 3 * H:4 * H])
        cx_new = f_g * cx + i_g * g_g
        hx_new = o_g * jnp.tanh(cx_new)
        w_dec, b_dec = self._decoders_ref[action_name]
        logits = (hx_new @ w_dec + b_dec) / self.softmax_temperature
        if self.mode == 'train':
            logits = self.tanh_c * jnp.tanh(logits)
        return logits, (hx_new, cx_new)


if __name__ == "__main__":
    # Small synthetic search space (GraphNAS-style)
    search_space = {
        "attention_type": ["gat", "gcn", "cos", "const"],
        "aggregator_type": ["sum", "mean", "max", "mlp"],
        "activate_function": ["sigmoid", "tanh", "relu", "elu", "leaky_relu", "linear"],
        "number_of_heads": [1, 2, 4, 8],
        "hidden_units": [8, 16, 32, 64, 128, 256],
    }
    action_list = ["attention_type", "aggregator_type", "activate_function",
                   "number_of_heads", "hidden_units"]

    B, H = 2, 32
    ctrl = SimpleNASControllerPallas(search_space, action_list,
                                     controller_hid=H, mode='train', seed=0)

    key = jax.random.PRNGKey(0)
    k1, k2, k3 = jax.random.split(key, 3)
    inputs = jax.random.normal(k1, (B, H), jnp.float32)
    hidden0 = (jax.random.normal(k2, (B, H), jnp.float32),
               jax.random.normal(k3, (B, H), jnp.float32))

    # Fused path: all 5 action steps in ONE pallas_call, hidden state chained in
    # vregs/VMEM (input held constant per step, as in the single-step driver).
    inputs_seq = jnp.broadcast_to(inputs, (len(action_list), B, H)).astype(jnp.float32)
    logits_list, hidden_fused = ctrl.forward_all(inputs_seq, hidden0)
    logits_list = jax.block_until_ready(logits_list)
    hidden_fused = jax.block_until_ready(hidden_fused)

    # Pure-JAX chained reference.
    ok = True
    hidden_ref = hidden0
    for i, a in enumerate(action_list):
        lr, hidden_ref = ctrl.forward_ref(inputs, hidden_ref, a)
        ok &= bool(jnp.allclose(logits_list[i], lr, atol=1e-5, rtol=1e-5))
    ok &= bool(jnp.allclose(hidden_fused[0], hidden_ref[0], atol=1e-5, rtol=1e-5))
    ok &= bool(jnp.allclose(hidden_fused[1], hidden_ref[1], atol=1e-5, rtol=1e-5))

    # Single-step forward() API parity check.
    l1, h1 = ctrl.forward(inputs, hidden0, action_list[0])
    l1 = jax.block_until_ready(l1)
    h1 = jax.block_until_ready(h1)
    lr1, hr1 = ctrl.forward_ref(inputs, hidden0, action_list[0])
    ok &= bool(jnp.allclose(l1, lr1, atol=1e-5, rtol=1e-5))
    ok &= bool(jnp.allclose(h1[0], hr1[0], atol=1e-5, rtol=1e-5))
    ok &= bool(jnp.allclose(h1[1], hr1[1], atol=1e-5, rtol=1e-5))

    # Mode-switch check (cache key now includes mode): eval-mode logits skip tanh_c*tanh.
    ctrl.mode = 'eval'
    le, _ = ctrl.forward(inputs, hidden0, action_list[0])
    le = jax.block_until_ready(le)
    lre, _ = ctrl.forward_ref(inputs, hidden0, action_list[0])
    ok &= bool(jnp.allclose(le, lre, atol=1e-5, rtol=1e-5))
    ctrl.mode = 'train'

    if ok:
        print("KERNEL_OK")
    else:
        print("KERNEL_MISMATCH")
</pallas_src>

<mosaic_0001>
module attributes {stable_mosaic.version = 11 : i64} {
  func.func @_fused_controller_kernel(%arg0: i32, %arg1: memref<5x2x32xf32, #tpu.memory_space<vmem>>, %arg2: memref<2x32xf32, #tpu.memory_space<vmem>>, %arg3: memref<2x32xf32, #tpu.memory_space<vmem>>, %arg4: memref<64x128xf32, #tpu.memory_space<vmem>>, %arg5: memref<1x128xf32, #tpu.memory_space<vmem>>, %arg6: memref<32x128xf32, #tpu.memory_space<vmem>>, %arg7: memref<5x2x128xf32, #tpu.memory_space<vmem>>, %arg8: memref<2x32xf32, #tpu.memory_space<vmem>>, %arg9: memref<2x32xf32, #tpu.memory_space<vmem>>, %arg10: memref<2x64xf32, #tpu.memory_space<vmem>>) attributes {dimension_semantics = [#tpu.dimension_semantics<arbitrary>], iteration_bounds = array<i64: 1>, scalar_prefetch = 0 : i64, scratch_operands = 1 : i64, tpu.core_type = #tpu.core_type<tc>, window_params = [{pipeline_mode = #tpu.pipeline_mode<synchronous>, transform_indices = @transform_0, window_bounds = array<i64: 5, 2, 32>}, {pipeline_mode = #tpu.pipeline_mode<synchronous>, transform_indices = @transform_1, window_bounds = array<i64: 2, 32>}, {pipeline_mode = #tpu.pipeline_mode<synchronous>, transform_indices = @transform_2, window_bounds = array<i64: 2, 32>}, {pipeline_mode = #tpu.pipeline_mode<synchronous>, transform_indices = @transform_3, window_bounds = array<i64: 64, 128>}, {pipeline_mode = #tpu.pipeline_mode<synchronous>, transform_indices = @transform_4, window_bounds = array<i64: 1, 128>}, {pipeline_mode = #tpu.pipeline_mode<synchronous>, transform_indices = @transform_5, window_bounds = array<i64: 32, 128>}, {pipeline_mode = #tpu.pipeline_mode<synchronous>, transform_indices = @transform_6, window_bounds = array<i64: 5, 2, 128>}, {pipeline_mode = #tpu.pipeline_mode<synchronous>, transform_indices = @transform_7, window_bounds = array<i64: 2, 32>}, {pipeline_mode = #tpu.pipeline_mode<synchronous>, transform_indices = @transform_8, window_bounds = array<i64: 2, 32>}]} {
    %c0 = arith.constant 0 : index
    %c0_0 = arith.constant 0 : index
    %0 = vector.load %arg4[%c0, %c0_0] : memref<64x128xf32, #tpu.memory_space<vmem>>, vector<64x128xf32>
    %c0_1 = arith.constant 0 : index
    %c0_2 = arith.constant 0 : index
    %1 = vector.load %arg5[%c0_1, %c0_2] : memref<1x128xf32, #tpu.memory_space<vmem>>, vector<1x128xf32>
    %c0_3 = arith.constant 0 : index
    %c0_4 = arith.constant 0 : index
    %2 = vector.load %arg6[%c0_3, %c0_4] : memref<32x128xf32, #tpu.memory_space<vmem>>, vector<32x128xf32>
    %c0_5 = arith.constant 0 : index
    %c0_6 = arith.constant 0 : index
    %3 = vector.load %arg2[%c0_5, %c0_6] : memref<2x32xf32, #tpu.memory_space<vmem>>, vector<2x32xf32>
    %c0_7 = arith.constant 0 : index
    %c32 = arith.constant 32 : index
    %4 = vector.load %arg10[%c0_7, %c32] : memref<2x64xf32, #tpu.memory_space<vmem>>, vector<2x32xf32>
    tpu.vector_store %arg10[%c0_7, %c32], %3 {strides = array<i32>} : memref<2x64xf32, #tpu.memory_space<vmem>>, vector<2x32xf32>,
    %c0_8 = arith.constant 0 : index
    %c0_9 = arith.constant 0 : index
    %5 = vector.load %arg3[%c0_8, %c0_9] : memref<2x32xf32, #tpu.memory_space<vmem>>, vector<2x32xf32>
    %c0_10 = arith.constant 0 : index
    %c0_11 = arith.constant 0 : index
    %c0_12 = arith.constant 0 : index
    %6 = vector.load %arg1[%c0_10, %c0_11, %c0_12] : memref<5x2x32xf32, #tpu.memory_space<vmem>>, vector<1x2x32xf32>
    %7 = vector.shape_cast %6 : vector<1x2x32xf32> to vector<2x32xf32>
    %c0_13 = arith.constant 0 : index
    %c0_14 = arith.constant 0 : index
    %8 = vector.load %arg10[%c0_13, %c0_14] : memref<2x64xf32, #tpu.memory_space<vmem>>, vector<2x32xf32>
    tpu.vector_store %arg10[%c0_13, %c0_14], %7 {strides = array<i32>} : memref<2x64xf32, #tpu.memory_space<vmem>>, vector<2x32xf32>,
    %c0_15 = arith.constant 0 : index
    %c0_16 = arith.constant 0 : index
    %9 = vector.load %arg10[%c0_15, %c0_16] : memref<2x64xf32, #tpu.memory_space<vmem>>, vector<2x64xf32>
    %cst = arith.constant dense<0.000000e+00> : vector<2x128xf32>
    %10 = tpu.matmul %9, %0, %cst {dimension_numbers = #tpu.dot_dimension_numbers<[1], [0], [0], [1], [0, 0, 1, 1], [], []>} : vector<2x64xf32>, vector<64x128xf32>, vector<2x128xf32> -> vector<2x128xf32>
    %11 = vector.broadcast %1 : vector<1x128xf32> to vector<2x128xf32>
    %12 = arith.addf %10, %11 : vector<2x128xf32>
    %cst_17 = arith.constant 5.000000e-01 : f32
    %13 = vector.broadcast %cst_17 : f32 to vector<2x128xf32>
    %14 = arith.mulf %13, %12 : vector<2x128xf32>
    %15 = math.tanh %14 : vector<2x128xf32>
    %cst_18 = arith.constant 5.000000e-01 : f32
    %16 = vector.broadcast %cst_18 : f32 to vector<2x128xf32>
    %17 = arith.mulf %16, %15 : vector<2x128xf32>
    %cst_19 = arith.constant 5.000000e-01 : f32
    %18 = vector.broadcast %cst_19 : f32 to vector<2x128xf32>
    %19 = arith.addf %17, %18 : vector<2x128xf32>
    %20 = vector.extract_strided_slice %19 {offsets = [0, 0], sizes = [2, 32], strides = [1, 1]} : vector<2x128xf32> to vector<2x32xf32>
    %21 = vector.extract_strided_slice %19 {offsets = [0, 32], sizes = [2, 32], strides = [1, 1]} : vector<2x128xf32> to vector<2x32xf32>
    %22 = vector.extract_strided_slice %15 {offsets = [0, 64], sizes = [2, 32], strides = [1, 1]} : vector<2x128xf32> to vector<2x32xf32>
    %23 = vector.extract_strided_slice %19 {offsets = [0, 96], sizes = [2, 32], strides = [1, 1]} : vector<2x128xf32> to vector<2x32xf32>
    %24 = arith.mulf %21, %5 : vector<2x32xf32>
    %25 = arith.mulf %20, %22 : vector<2x32xf32>
    %26 = arith.addf %24, %25 : vector<2x32xf32>
    %27 = math.tanh %26 : vector<2x32xf32>
    %28 = arith.mulf %23, %27 : vector<2x32xf32>
    %cst_20 = arith.constant dense<0.000000e+00> : vector<2x128xf32>
    %29 = tpu.matmul %28, %2, %cst_20 {dimension_numbers = #tpu.dot_dimension_numbers<[1], [0], [0], [1], [0, 0, 1, 1], [], []>} : vector<2x32xf32>, vector<32x128xf32>, vector<2x128xf32> -> vector<2x128xf32>
    %30 = math.tanh %29 : vector<2x128xf32>
    %cst_21 = arith.constant 2.500000e+00 : f32
    %31 = vector.broadcast %cst_21 : f32 to vector<2x128xf32>
    %32 = arith.mulf %31, %30 : vector<2x128xf32>
    %c0_22 = arith.constant 0 : index
    %c0_23 = arith.constant 0 : index
    %c0_24 = arith.constant 0 : index
    %33 = vector.load %arg7[%c0_22, %c0_23, %c0_24] : memref<5x2x128xf32, #tpu.memory_space<vmem>>, vector<1x2x128xf32>
    %34 = vector.shape_cast %33 : vector<1x2x128xf32> to vector<2x128xf32>
    %35 = vector.shape_cast %32 : vector<2x128xf32> to vector<1x2x128xf32>
    tpu.vector_store %arg7[%c0_22, %c0_23, %c0_24], %35 {strides = array<i32>} : memref<5x2x128xf32, #tpu.memory_space<vmem>>, vector<1x2x128xf32>,
    %c0_25 = arith.constant 0 : index
    %c32_26 = arith.constant 32 : index
    %36 = vector.load %arg10[%c0_25, %c32_26] : memref<2x64xf32, #tpu.memory_space<vmem>>, vector<2x32xf32>
    tpu.vector_store %arg10[%c0_25, %c32_26], %28 {strides = array<i32>} : memref<2x64xf32, #tpu.memory_space<vmem>>, vector<2x32xf32>,
    %c1 = arith.constant 1 : index
    %c0_27 = arith.constant 0 : index
    %c0_28 = arith.constant 0 : index
    %37 = vector.load %arg1[%c1, %c0_27, %c0_28] : memref<5x2x32xf32, #tpu.memory_space<vmem>>, vector<1x2x32xf32>
    %38 = vector.shape_cast %37 : vector<1x2x32xf32> to vector<2x32xf32>
    %c0_29 = arith.constant 0 : index
    %c0_30 = arith.constant 0 : index
    %39 = vector.load %arg10[%c0_29, %c0_30] : memref<2x64xf32, #tpu.memory_space<vmem>>, vector<2x32xf32>
    tpu.vector_store %arg10[%c0_29, %c0_30], %38 {strides = array<i32>} : memref<2x64xf32, #tpu.memory_space<vmem>>, vector<2x32xf32>,
    %c0_31 = arith.constant 0 : index
    %c0_32 = arith.constant 0 : index
    %40 = vector.load %arg10[%c0_31, %c0_32] : memref<2x64xf32, #tpu.memory_space<vmem>>, vector<2x64xf32>
    %cst_33 = arith.constant dense<0.000000e+00> : vector<2x128xf32>
    %41 = tpu.matmul %40, %0, %cst_33 {dimension_numbers = #tpu.dot_dimension_numbers<[1], [0], [0], [1], [0, 0, 1, 1], [], []>} : vector<2x64xf32>, vector<64x128xf32>, vector<2x128xf32> -> vector<2x128xf32>
    %42 = vector.broadcast %1 : vector<1x128xf32> to vector<2x128xf32>
    %43 = arith.addf %41, %42 : vector<2x128xf32>
    %cst_34 = arith.constant 5.000000e-01 : f32
    %44 = vector.broadcast %cst_34 : f32 to vector<2x128xf32>
    %45 = arith.mulf %44, %43 : vector<2x128xf32>
    %46 = math.tanh %45 : vector<2x128xf32>
    %cst_35 = arith.constant 5.000000e-01 : f32
    %47 = vector.broadcast %cst_35 : f32 to vector<2x128xf32>
    %48 = arith.mulf %47, %46 : vector<2x128xf32>
    %cst_36 = arith.constant 5.000000e-01 : f32
    %49 = vector.broadcast %cst_36 : f32 to vector<2x128xf32>
    %50 = arith.addf %48, %49 : vector<2x128xf32>
    %51 = vector.extract_strided_slice %50 {offsets = [0, 0], sizes = [2, 32], strides = [1, 1]} : vector<2x128xf32> to vector<2x32xf32>
    %52 = vector.extract_strided_slice %50 {offsets = [0, 32], sizes = [2, 32], strides = [1, 1]} : vector<2x128xf32> to vector<2x32xf32>
    %53 = vector.extract_strided_slice %46 {offsets = [0, 64], sizes = [2, 32], strides = [1, 1]} : vector<2x128xf32> to vector<2x32xf32>
    %54 = vector.extract_strided_slice %50 {offsets = [0, 96], sizes = [2, 32], strides = [1, 1]} : vector<2x128xf32> to vector<2x32xf32>
    %55 = arith.mulf %52, %26 : vector<2x32xf32>
    %56 = arith.mulf %51, %53 : vector<2x32xf32>
    %57 = arith.addf %55, %56 : vector<2x32xf32>
    %58 = math.tanh %57 : vector<2x32xf32>
    %59 = arith.mulf %54, %58 : vector<2x32xf32>
    %cst_37 = arith.constant dense<0.000000e+00> : vector<2x128xf32>
    %60 = tpu.matmul %59, %2, %cst_37 {dimension_numbers = #tpu.dot_dimension_numbers<[1], [0], [0], [1], [0, 0, 1, 1], [], []>} : vector<2x32xf32>, vector<32x128xf32>, vector<2x128xf32> -> vector<2x128xf32>
    %61 = math.tanh %60 : vector<2x128xf32>
    %cst_38 = arith.constant 2.500000e+00 : f32
    %62 = vector.broadcast %cst_38 : f32 to vector<2x128xf32>
    %63 = arith.mulf %62, %61 : vector<2x128xf32>
    %c1_39 = arith.constant 1 : index
    %c0_40 = arith.constant 0 : index
    %c0_41 = arith.constant 0 : index
    %64 = vector.load %arg7[%c1_39, %c0_40, %c0_41] : memref<5x2x128xf32, #tpu.memory_space<vmem>>, vector<1x2x128xf32>
    %65 = vector.shape_cast %64 : vector<1x2x128xf32> to vector<2x128xf32>
    %66 = vector.shape_cast %63 : vector<2x128xf32> to vector<1x2x128xf32>
    tpu.vector_store %arg7[%c1_39, %c0_40, %c0_41], %66 {strides = array<i32>} : memref<5x2x128xf32, #tpu.memory_space<vmem>>, vector<1x2x128xf32>,
    %c0_42 = arith.constant 0 : index
    %c32_43 = arith.constant 32 : index
    %67 = vector.load %arg10[%c0_42, %c32_43] : memref<2x64xf32, #tpu.memory_space<vmem>>, vector<2x32xf32>
    tpu.vector_store %arg10[%c0_42, %c32_43], %59 {strides = array<i32>} : memref<2x64xf32, #tpu.memory_space<vmem>>, vector<2x32xf32>,
    %c2 = arith.constant 2 : index
    %c0_44 = arith.constant 0 : index
    %c0_45 = arith.constant 0 : index
    %68 = vector.load %arg1[%c2, %c0_44, %c0_45] : memref<5x2x32xf32, #tpu.memory_space<vmem>>, vector<1x2x32xf32>
    %69 = vector.shape_cast %68 : vector<1x2x32xf32> to vector<2x32xf32>
    %c0_46 = arith.constant 0 : index
    %c0_47 = arith.constant 0 : index
    %70 = vector.load %arg10[%c0_46, %c0_47] : memref<2x64xf32, #tpu.memory_space<vmem>>, vector<2x32xf32>
    tpu.vector_store %arg10[%c0_46, %c0_47], %69 {strides = array<i32>} : memref<2x64xf32, #tpu.memory_space<vmem>>, vector<2x32xf32>,
    %c0_48 = arith.constant 0 : index
    %c0_49 = arith.constant 0 : index
    %71 = vector.load %arg10[%c0_48, %c0_49] : memref<2x64xf32, #tpu.memory_space<vmem>>, vector<2x64xf32>
    %cst_50 = arith.constant dense<0.000000e+00> : vector<2x128xf32>
    %72 = tpu.matmul %71, %0, %cst_50 {dimension_numbers = #tpu.dot_dimension_numbers<[1], [0], [0], [1], [0, 0, 1, 1], [], []>} : vector<2x64xf32>, vector<64x128xf32>, vector<2x128xf32> -> vector<2x128xf32>
    %73 = vector.broadcast %1 : vector<1x128xf32> to vector<2x128xf32>
    %74 = arith.addf %72, %73 : vector<2x128xf32>
    %cst_51 = arith.constant 5.000000e-01 : f32
    %75 = vector.broadcast %cst_51 : f32 to vector<2x128xf32>
    %76 = arith.mulf %75, %74 : vector<2x128xf32>
    %77 = math.tanh %76 : vector<2x128xf32>
    %cst_52 = arith.constant 5.000000e-01 : f32
    %78 = vector.broadcast %cst_52 : f32 to vector<2x128xf32>
    %79 = arith.mulf %78, %77 : vector<2x128xf32>
    %cst_53 = arith.constant 5.000000e-01 : f32
    %80 = vector.broadcast %cst_53 : f32 to vector<2x128xf32>
    %81 = arith.addf %79, %80 : vector<2x128xf32>
    %82 = vector.extract_strided_slice %81 {offsets = [0, 0], sizes = [2, 32], strides = [1, 1]} : vector<2x128xf32> to vector<2x32xf32>
    %83 = vector.extract_strided_slice %81 {offsets = [0, 32], sizes = [2, 32], strides = [1, 1]} : vector<2x128xf32> to vector<2x32xf32>
    %84 = vector.extract_strided_slice %77 {offsets = [0, 64], sizes = [2, 32], strides = [1, 1]} : vector<2x128xf32> to vector<2x32xf32>
    %85 = vector.extract_strided_slice %81 {offsets = [0, 96], sizes = [2, 32], strides = [1, 1]} : vector<2x128xf32> to vector<2x32xf32>
    %86 = arith.mulf %83, %57 : vector<2x32xf32>
    %87 = arith.mulf %82, %84 : vector<2x32xf32>
    %88 = arith.addf %86, %87 : vector<2x32xf32>
    %89 = math.tanh %88 : vector<2x32xf32>
    %90 = arith.mulf %85, %89 : vector<2x32xf32>
    %cst_54 = arith.constant dense<0.000000e+00> : vector<2x128xf32>
    %91 = tpu.matmul %90, %2, %cst_54 {dimension_numbers = #tpu.dot_dimension_numbers<[1], [0], [0], [1], [0, 0, 1, 1], [], []>} : vector<2x32xf32>, vector<32x128xf32>, vector<2x128xf32> -> vector<2x128xf32>
    %92 = math.tanh %91 : vector<2x128xf32>
    %cst_55 = arith.constant 2.500000e+00 : f32
    %93 = vector.broadcast %cst_55 : f32 to vector<2x128xf32>
    %94 = arith.mulf %93, %92 : vector<2x128xf32>
    %c2_56 = arith.constant 2 : index
    %c0_57 = arith.constant 0 : index
    %c0_58 = arith.constant 0 : index
    %95 = vector.load %arg7[%c2_56, %c0_57, %c0_58] : memref<5x2x128xf32, #tpu.memory_space<vmem>>, vector<1x2x128xf32>
    %96 = vector.shape_cast %95 : vector<1x2x128xf32> to vector<2x128xf32>
    %97 = vector.shape_cast %94 : vector<2x128xf32> to vector<1x2x128xf32>
    tpu.vector_store %arg7[%c2_56, %c0_57, %c0_58], %97 {strides = array<i32>} : memref<5x2x128xf32, #tpu.memory_space<vmem>>, vector<1x2x128xf32>,
    %c0_59 = arith.constant 0 : index
    %c32_60 = arith.constant 32 : index
    %98 = vector.load %arg10[%c0_59, %c32_60] : memref<2x64xf32, #tpu.memory_space<vmem>>, vector<2x32xf32>
    tpu.vector_store %arg10[%c0_59, %c32_60], %90 {strides = array<i32>} : memref<2x64xf32, #tpu.memory_space<vmem>>, vector<2x32xf32>,
    %c3 = arith.constant 3 : index
    %c0_61 = arith.constant 0 : index
    %c0_62 = arith.constant 0 : index
    %99 = vector.load %arg1[%c3, %c0_61, %c0_62] : memref<5x2x32xf32, #tpu.memory_space<vmem>>, vector<1x2x32xf32>
    %100 = vector.shape_cast %99 : vector<1x2x32xf32> to vector<2x32xf32>
    %c0_63 = arith.constant 0 : index
    %c0_64 = arith.constant 0 : index
    %101 = vector.load %arg10[%c0_63, %c0_64] : memref<2x64xf32, #tpu.memory_space<vmem>>, vector<2x32xf32>
    tpu.vector_store %arg10[%c0_63, %c0_64], %100 {strides = array<i32>} : memref<2x64xf32, #tpu.memory_space<vmem>>, vector<2x32xf32>,
    %c0_65 = arith.constant 0 : index
    %c0_66 = arith.constant 0 : index
    %102 = vector.load %arg10[%c0_65, %c0_66] : memref<2x64xf32, #tpu.memory_space<vmem>>, vector<2x64xf32>
    %cst_67 = arith.constant dense<0.000000e+00> : vector<2x128xf32>
    %103 = tpu.matmul %102, %0, %cst_67 {dimension_numbers = #tpu.dot_dimension_numbers<[1], [0], [0], [1], [0, 0, 1, 1], [], []>} : vector<2x64xf32>, vector<64x128xf32>, vector<2x128xf32> -> vector<2x128xf32>
    %104 = vector.broadcast %1 : vector<1x128xf32> to vector<2x128xf32>
    %105 = arith.addf %103, %104 : vector<2x128xf32>
    %cst_68 = arith.constant 5.000000e-01 : f32
    %106 = vector.broadcast %cst_68 : f32 to vector<2x128xf32>
    %107 = arith.mulf %106, %105 : vector<2x128xf32>
    %108 = math.tanh %107 : vector<2x128xf32>
    %cst_69 = arith.constant 5.000000e-01 : f32
    %109 = vector.broadcast %cst_69 : f32 to vector<2x128xf32>
    %110 = arith.mulf %109, %108 : vector<2x128xf32>
    %cst_70 = arith.constant 5.000000e-01 : f32
    %111 = vector.broadcast %cst_70 : f32 to vector<2x128xf32>
    %112 = arith.addf %110, %111 : vector<2x128xf32>
    %113 = vector.extract_strided_slice %112 {offsets = [0, 0], sizes = [2, 32], strides = [1, 1]} : vector<2x128xf32> to vector<2x32xf32>
    %114 = vector.extract_strided_slice %112 {offsets = [0, 32], sizes = [2, 32], strides = [1, 1]} : vector<2x128xf32> to vector<2x32xf32>
    %115 = vector.extract_strided_slice %108 {offsets = [0, 64], sizes = [2, 32], strides = [1, 1]} : vector<2x128xf32> to vector<2x32xf32>
    %116 = vector.extract_strided_slice %112 {offsets = [0, 96], sizes = [2, 32], strides = [1, 1]} : vector<2x128xf32> to vector<2x32xf32>
    %117 = arith.mulf %114, %88 : vector<2x32xf32>
    %118 = arith.mulf %113, %115 : vector<2x32xf32>
    %119 = arith.addf %117, %118 : vector<2x32xf32>
    %120 = math.tanh %119 : vector<2x32xf32>
    %121 = arith.mulf %116, %120 : vector<2x32xf32>
    %cst_71 = arith.constant dense<0.000000e+00> : vector<2x128xf32>
    %122 = tpu.matmul %121, %2, %cst_71 {dimension_numbers = #tpu.dot_dimension_numbers<[1], [0], [0], [1], [0, 0, 1, 1], [], []>} : vector<2x32xf32>, vector<32x128xf32>, vector<2x128xf32> -> vector<2x128xf32>
    %123 = math.tanh %122 : vector<2x128xf32>
    %cst_72 = arith.constant 2.500000e+00 : f32
    %124 = vector.broadcast %cst_72 : f32 to vector<2x128xf32>
    %125 = arith.mulf %124, %123 : vector<2x128xf32>
    %c3_73 = arith.constant 3 : index
    %c0_74 = arith.constant 0 : index
    %c0_75 = arith.constant 0 : index
    %126 = vector.load %arg7[%c3_73, %c0_74, %c0_75] : memref<5x2x128xf32, #tpu.memory_space<vmem>>, vector<1x2x128xf32>
    %127 = vector.shape_cast %126 : vector<1x2x128xf32> to vector<2x128xf32>
    %128 = vector.shape_cast %125 : vector<2x128xf32> to vector<1x2x128xf32>
    tpu.vector_store %arg7[%c3_73, %c0_74, %c0_75], %128 {strides = array<i32>} : memref<5x2x128xf32, #tpu.memory_space<vmem>>, vector<1x2x128xf32>,
    %c0_76 = arith.constant 0 : index
    %c32_77 = arith.constant 32 : index
    %129 = vector.load %arg10[%c0_76, %c32_77] : memref<2x64xf32, #tpu.memory_space<vmem>>, vector<2x32xf32>
    tpu.vector_store %arg10[%c0_76, %c32_77], %121 {strides = array<i32>} : memref<2x64xf32, #tpu.memory_space<vmem>>, vector<2x32xf32>,
    %c4 = arith.constant 4 : index
    %c0_78 = arith.constant 0 : index
    %c0_79 = arith.constant 0 : index
    %130 = vector.load %arg1[%c4, %c0_78, %c0_79] : memref<5x2x32xf32, #tpu.memory_space<vmem>>, vector<1x2x32xf32>
    %131 = vector.shape_cast %130 : vector<1x2x32xf32> to vector<2x32xf32>
    %c0_80 = arith.constant 0 : index
    %c0_81 = arith.constant 0 : index
    %132 = vector.load %arg10[%c0_80, %c0_81] : memref<2x64xf32, #tpu.memory_space<vmem>>, vector<2x32xf32>
    tpu.vector_store %arg10[%c0_80, %c0_81], %131 {strides = array<i32>} : memref<2x64xf32, #tpu.memory_space<vmem>>, vector<2x32xf32>,
    %c0_82 = arith.constant 0 : index
    %c0_83 = arith.constant 0 : index
    %133 = vector.load %arg10[%c0_82, %c0_83] : memref<2x64xf32, #tpu.memory_space<vmem>>, vector<2x64xf32>
    %cst_84 = arith.constant dense<0.000000e+00> : vector<2x128xf32>
    %134 = tpu.matmul %133, %0, %cst_84 {dimension_numbers = #tpu.dot_dimension_numbers<[1], [0], [0], [1], [0, 0, 1, 1], [], []>} : vector<2x64xf32>, vector<64x128xf32>, vector<2x128xf32> -> vector<2x128xf32>
    %135 = vector.broadcast %1 : vector<1x128xf32> to vector<2x128xf32>
    %136 = arith.addf %134, %135 : vector<2x128xf32>
    %cst_85 = arith.constant 5.000000e-01 : f32
    %137 = vector.broadcast %cst_85 : f32 to vector<2x128xf32>
    %138 = arith.mulf %137, %136 : vector<2x128xf32>
    %139 = math.tanh %138 : vector<2x128xf32>
    %cst_86 = arith.constant 5.000000e-01 : f32
    %140 = vector.broadcast %cst_86 : f32 to vector<2x128xf32>
    %141 = arith.mulf %140, %139 : vector<2x128xf32>
    %cst_87 = arith.constant 5.000000e-01 : f32
    %142 = vector.broadcast %cst_87 : f32 to vector<2x128xf32>
    %143 = arith.addf %141, %142 : vector<2x128xf32>
    %144 = vector.extract_strided_slice %143 {offsets = [0, 0], sizes = [2, 32], strides = [1, 1]} : vector<2x128xf32> to vector<2x32xf32>
    %145 = vector.extract_strided_slice %143 {offsets = [0, 32], sizes = [2, 32], strides = [1, 1]} : vector<2x128xf32> to vector<2x32xf32>
    %146 = vector.extract_strided_slice %139 {offsets = [0, 64], sizes = [2, 32], strides = [1, 1]} : vector<2x128xf32> to vector<2x32xf32>
    %147 = vector.extract_strided_slice %143 {offsets = [0, 96], sizes = [2, 32], strides = [1, 1]} : vector<2x128xf32> to vector<2x32xf32>
    %148 = arith.mulf %145, %119 : vector<2x32xf32>
    %149 = arith.mulf %144, %146 : vector<2x32xf32>
    %150 = arith.addf %148, %149 : vector<2x32xf32>
    %151 = math.tanh %150 : vector<2x32xf32>
    %152 = arith.mulf %147, %151 : vector<2x32xf32>
    %cst_88 = arith.constant dense<0.000000e+00> : vector<2x128xf32>
    %153 = tpu.matmul %152, %2, %cst_88 {dimension_numbers = #tpu.dot_dimension_numbers<[1], [0], [0], [1], [0, 0, 1, 1], [], []>} : vector<2x32xf32>, vector<32x128xf32>, vector<2x128xf32> -> vector<2x128xf32>
    %154 = math.tanh %153 : vector<2x128xf32>
    %cst_89 = arith.constant 2.500000e+00 : f32
    %155 = vector.broadcast %cst_89 : f32 to vector<2x128xf32>
    %156 = arith.mulf %155, %154 : vector<2x128xf32>
    %c4_90 = arith.constant 4 : index
    %c0_91 = arith.constant 0 : index
    %c0_92 = arith.constant 0 : index
    %157 = vector.load %arg7[%c4_90, %c0_91, %c0_92] : memref<5x2x128xf32, #tpu.memory_space<vmem>>, vector<1x2x128xf32>
    %158 = vector.shape_cast %157 : vector<1x2x128xf32> to vector<2x128xf32>
    %159 = vector.shape_cast %156 : vector<2x128xf32> to vector<1x2x128xf32>
    tpu.vector_store %arg7[%c4_90, %c0_91, %c0_92], %159 {strides = array<i32>} : memref<5x2x128xf32, #tpu.memory_space<vmem>>, vector<1x2x128xf32>,
    %c0_93 = arith.constant 0 : index
    %c32_94 = arith.constant 32 : index
    %160 = vector.load %arg10[%c0_93, %c32_94] : memref<2x64xf32, #tpu.memory_space<vmem>>, vector<2x32xf32>
    tpu.vector_store %arg10[%c0_93, %c32_94], %152 {strides = array<i32>} : memref<2x64xf32, #tpu.memory_space<vmem>>, vector<2x32xf32>,
    %c0_95 = arith.constant 0 : index
    %c0_96 = arith.constant 0 : index
    %161 = vector.load %arg8[%c0_95, %c0_96] : memref<2x32xf32, #tpu.memory_space<vmem>>, vector<2x32xf32>
    tpu.vector_store %arg8[%c0_95, %c0_96], %152 {strides = array<i32>} : memref<2x32xf32, #tpu.memory_space<vmem>>, vector<2x32xf32>,
    %c0_97 = arith.constant 0 : index
    %c0_98 = arith.constant 0 : index
    %162 = vector.load %arg9[%c0_97, %c0_98] : memref<2x32xf32, #tpu.memory_space<vmem>>, vector<2x32xf32>
    tpu.vector_store %arg9[%c0_97, %c0_98], %150 {strides = array<i32>} : memref<2x32xf32, #tpu.memory_space<vmem>>, vector<2x32xf32>,
    return
  }
  func.func @transform_0(%arg0: i32) -> (i32, i32, i32) {
    %c0_i32 = arith.constant 0 : i32
    %c0_i32_0 = arith.constant 0 : i32
    %c0_i32_1 = arith.constant 0 : i32
    %c0_i32_2 = arith.constant 0 : i32
    return %c0_i32, %c0_i32_0, %c0_i32_1 : i32, i32, i32
  }
  func.func @transform_1(%arg0: i32) -> (i32, i32) {
    %c0_i32 = arith.constant 0 : i32
    %c0_i32_0 = arith.constant 0 : i32
    %c0_i32_1 = arith.constant 0 : i32
    return %c0_i32, %c0_i32_0 : i32, i32
  }
  func.func @transform_2(%arg0: i32) -> (i32, i32) {
    %c0_i32 = arith.constant 0 : i32
    %c0_i32_0 = arith.constant 0 : i32
    %c0_i32_1 = arith.constant 0 : i32
    return %c0_i32, %c0_i32_0 : i32, i32
  }
  func.func @transform_3(%arg0: i32) -> (i32, i32) {
    %c0_i32 = arith.constant 0 : i32
    %c0_i32_0 = arith.constant 0 : i32
    %c0_i32_1 = arith.constant 0 : i32
    return %c0_i32, %c0_i32_0 : i32, i32
  }
  func.func @transform_4(%arg0: i32) -> (i32, i32) {
    %c0_i32 = arith.constant 0 : i32
    %c0_i32_0 = arith.constant 0 : i32
    %c0_i32_1 = arith.constant 0 : i32
    return %c0_i32, %c0_i32_0 : i32, i32
  }
  func.func @transform_5(%arg0: i32) -> (i32, i32) {
    %c0_i32 = arith.constant 0 : i32
    %c0_i32_0 = arith.constant 0 : i32
    %c0_i32_1 = arith.constant 0 : i32
    return %c0_i32, %c0_i32_0 : i32, i32
  }
  func.func @transform_6(%arg0: i32) -> (i32, i32, i32) {
    %c0_i32 = arith.constant 0 : i32
    %c0_i32_0 = arith.constant 0 : i32
    %c0_i32_1 = arith.constant 0 : i32
    %c0_i32_2 = arith.constant 0 : i32
    return %c0_i32, %c0_i32_0, %c0_i32_1 : i32, i32, i32
  }
  func.func @transform_7(%arg0: i32) -> (i32, i32) {
    %c0_i32 = arith.constant 0 : i32
    %c0_i32_0 = arith.constant 0 : i32
    %c0_i32_1 = arith.constant 0 : i32
    return %c0_i32, %c0_i32_0 : i32, i32
  }
  func.func @transform_8(%arg0: i32) -> (i32, i32) {
    %c0_i32 = arith.constant 0 : i32
    %c0_i32_0 = arith.constant 0 : i32
    %c0_i32_1 = arith.constant 0 : i32
    return %c0_i32, %c0_i32_0 : i32, i32
  }
}

</mosaic_0001>

<llo_original>
// kernel: tpu_custom_call.1
$region0: #{tpu_custom_call.1}
  #allocation0 [shape = 'u32[]', space=smem, size = 0x4, offset = 0x4, fixed_abs, tag = 'smem constant byte address 0x4 - core index']
  #allocation1 [shape = 'u32[144,128]{1,0:T(1,128)}', space=vmem, size = 0x12000, scoped, tag = 'internal scratch']
  #allocation2 [shape = 'f32[2,64]{1,0:T(2,128)}', space=vmem, size = 0x400, scoped, tag = 'scratch operand']
  %s0 = inlined_call_operand.hbm [shape: f32[5,2,32], index: 0, kind: input, shape index: {}]
  %s1 = inlined_call_operand.vmem [shape: f32[2,32], index: 1, kind: input, shape index: {}]
  %s2 = inlined_call_operand.vmem [shape: f32[2,32], index: 2, kind: input, shape index: {}]
  %s3 = inlined_call_operand.hbm [shape: f32[64,128], index: 3, kind: input, shape index: {}]
  %s4 = inlined_call_operand.vmem [shape: f32[1,128], index: 4, kind: input, shape index: {}]
  %s5 = inlined_call_operand.hbm [shape: f32[32,128], index: 5, kind: input, shape index: {}]
  %s6 = inlined_call_operand.hbm [shape: f32[5,2,128], index: 6, kind: output, shape index: {0}]
  %s7 = inlined_call_operand.hbm [shape: f32[2,32], index: 7, kind: output, shape index: {1}]
  %s8 = inlined_call_operand.hbm [shape: f32[2,32], index: 8, kind: output, shape index: {2}]
  %9 = xla_tuple %s6, %s7, %s8
  %s10 = sld [smem:[#allocation0]]
  $region62: #{tpu_custom_call.1} parent=0
    _
  %s12 = ssub.s32 1, %s10
  %s13 = scalar_select 0, %s12, %s10
  $region1: #{tpu_custom_call.1} parent=0
    #allocation3 [shape = 'u8[5120]{0}', space=vmem, size = 0x1400, scoped, tag = 'input window, operand 0, single buffered']
    #allocation4 [shape = 's32[1]{0}', space=sflag, size = 0x4, scoped, tag = 'scoped memory for tpu_custom_call.1']
    #allocation5 [shape = 's32[1]{0}', space=sflag, size = 0x4, scoped, tag = 'scoped memory for tpu_custom_call.1']
    #allocation6 [shape = 'u8[32768]{0}', space=vmem, size = 0x8000, scoped, tag = 'input window, operand 3, single buffered']
    #allocation7 [shape = 's32[1]{0}', space=sflag, size = 0x4, scoped, tag = 'scoped memory for tpu_custom_call.1']
    #allocation8 [shape = 'u8[16384]{0}', space=vmem, size = 0x4000, scoped, tag = 'input window, operand 5, single buffered']
    #allocation9 [shape = 'u8[5120]{0}', space=vmem, size = 0x1400, scoped, tag = 'output window, operand 0, single buffered']
    #allocation10 [shape = 'u8[1024]{0}', space=vmem, size = 0x400, scoped, tag = 'output window, operand 1, single buffered']
    #allocation11 [shape = 's32[1]{0}', space=sflag, size = 0x4, scoped, tag = 'scoped memory for tpu_custom_call.1']
    #allocation12 [shape = 'u8[1024]{0}', space=vmem, size = 0x400, scoped, tag = 'output window, operand 2, single buffered']
    %14 = vsyncpa [#allocation4], 0
    %15 = vsyncpa [#allocation7], 0
    %16 = vsyncpa [#allocation5], 0
    %17 = vsyncpa [#allocation11], 0
    // Predicated region
    $region2: #{tpu_custom_call.1} parent=1 // pred_check
      _
    $region3: #{tpu_custom_call.1} parent=1 // pred_check_branch
      %19 = sbr.rel (0) target = $region5
    $region4: #{tpu_custom_call.1} parent=1 // pred_region
      %s21 = ssub.s32 160, 160
      %22 = vsyncadd [#allocation4], %s21
      %s23 = sshll.u32 [#allocation3], 4
      %s24 = int_to_ptr.vmem [resolvable:$true] %s23
      %29 = dma.hbm_to_vmem [thread:$0]  %s0, 160, %s24, [#allocation4], 32, 32, 2
    $region5: #{tpu_custom_call.1} parent=1 // pred_fallthru
      _
    // Predicated region
    $region6: #{tpu_custom_call.1} parent=1 // pred_check
      _
    $region7: #{tpu_custom_call.1} parent=1 // pred_check_branch
      %31 = sbr.rel (0) target = $region9
    $region8: #{tpu_custom_call.1} parent=1 // pred_region
      _
    $region9: #{tpu_custom_call.1} parent=1 // pred_fallthru
      _
    // Predicated region
    $region10: #{tpu_custom_call.1} parent=1 // pred_check
      _
    $region11: #{tpu_custom_call.1} parent=1 // pred_check_branch
      %33 = sbr.rel (0) target = $region13
    $region12: #{tpu_custom_call.1} parent=1 // pred_region
      _
    $region13: #{tpu_custom_call.1} parent=1 // pred_fallthru
      _
    // Predicated region
    $region14: #{tpu_custom_call.1} parent=1 // pred_check
      _
    $region15: #{tpu_custom_call.1} parent=1 // pred_check_branch
      %35 = sbr.rel (0) target = $region17
    $region16: #{tpu_custom_call.1} parent=1 // pred_region
      %s37 = ssub.s32 1024, 1024
      %38 = vsyncadd [#allocation7], %s37
      %s39 = sshll.u32 [#allocation6], 4
      %s40 = int_to_ptr.vmem [resolvable:$true] %s39
      %45 = dma.hbm_to_vmem [thread:$0]  %s3, 1024, %s40, [#allocation7], 128, 128, 8
    $region17: #{tpu_custom_call.1} parent=1 // pred_fallthru
      _
    // Predicated region
    $region18: #{tpu_custom_call.1} parent=1 // pred_check
      _
    $region19: #{tpu_custom_call.1} parent=1 // pred_check_branch
      %47 = sbr.rel (0) target = $region21
    $region20: #{tpu_custom_call.1} parent=1 // pred_region
      _
    $region21: #{tpu_custom_call.1} parent=1 // pred_fallthru
      _
    // Predicated region
    $region22: #{tpu_custom_call.1} parent=1 // pred_check
      _
    $region23: #{tpu_custom_call.1} parent=1 // pred_check_branch
      %49 = sbr.rel (0) target = $region25
    $region24: #{tpu_custom_call.1} parent=1 // pred_region
      %s51 = ssub.s32 512, 512
      %52 = vsyncadd [#allocation7], %s51
      %s53 = sshll.u32 [#allocation8], 4
      %s54 = int_to_ptr.vmem [resolvable:$true] %s53
      %59 = dma.hbm_to_vmem [thread:$0]  %s5, 512, %s54, [#allocation7], 128, 128, 8
    $region25: #{tpu_custom_call.1} parent=1 // pred_fallthru
      _
    // Predicated region
    $region26: #{tpu_custom_call.1} parent=1 // pred_check
      _
    $region27: #{tpu_custom_call.1} parent=1 // pred_check_branch
      %61 = sbr.rel (0) target = $region29
    $region28: #{tpu_custom_call.1} parent=1 // pred_region
      %62 = dma.done [#allocation4], 160
    $region29: #{tpu_custom_call.1} parent=1 // pred_fallthru
      _
    // Predicated region
    $region30: #{tpu_custom_call.1} parent=1 // pred_check
      _
    $region31: #{tpu_custom_call.1} parent=1 // pred_check_branch
      %64 = sbr.rel (0) target = $region33
    $region32: #{tpu_custom_call.1} parent=1 // pred_region
      %65 = dma.done [#allocation7], 1024
    $region33: #{tpu_custom_call.1} parent=1 // pred_fallthru
      _
    // Predicated region
    $region34: #{tpu_custom_call.1} parent=1 // pred_check
      _
    $region35: #{tpu_custom_call.1} parent=1 // pred_check_branch
      %67 = sbr.rel (0) target = $region37
    $region36: #{tpu_custom_call.1} parent=1 // pred_region
      %68 = dma.done [#allocation7], 512
    $region37: #{tpu_custom_call.1} parent=1 // pred_fallthru
      _
    %v69 = vld [vmem:[#allocation6] sm:$0xff]
    %v70 = vld [vmem:[#allocation6 + $0x8] sm:$0xff]
    %v71 = vld [vmem:[#allocation6 + $0x10] sm:$0xff]
    %v72 = vld [vmem:[#allocation6 + $0x18] sm:$0xff]
    %v73 = vld [vmem:[#allocation6 + $0x20] sm:$0xff]
    %v74 = vld [vmem:[#allocation6 + $0x28] sm:$0xff]
    %v75 = vld [vmem:[#allocation6 + $0x30] sm:$0xff]
    %v76 = vld [vmem:[#allocation6 + $0x38] sm:$0xff]
    %v77 = vld [vmem:[%s4] sm:$0x1]
    %v78 = vld [vmem:[#allocation8] sm:$0xff]
    %v79 = vld [vmem:[#allocation8 + $0x8] sm:$0xff]
    %v80 = vld [vmem:[#allocation8 + $0x10] sm:$0xff]
    %v81 = vld [vmem:[#allocation8 + $0x18] sm:$0xff]
    %v82 = vld [vmem:[%s1] sm:$0x3]
    %84 = vrot.lane.b32.xlu0 %v82, 32
    %v85 = vpop.permute.xlu0 %84
    %vm87 = vcmask 517376
    %88 = vst.msk [vmem:[#allocation2] sm:$0x3] %vm87, %v85
    %v89 = vld [vmem:[%s2] sm:$0x3]
    %v90 = vld [vmem:[#allocation3] sm:$0x3]
    %vm91 = vcmask 254976
    %92 = vst.msk [vmem:[#allocation2] sm:$0x3] %vm91, %v90
    %v93 = vld [vmem:[#allocation2] sm:$0x3]
    %v95 = vlaneseq
    %v96 = vshrl.u32 %v95, 7
    %v97 = vsub.s32 0, %v96
    %v98 = vrot.slane %v77, %v97
    %vm100 = vcmask 523264
    %v102 = vsel %vm100, %v93, 0
    %104 = vmatprep.subr.mxu0 0.0
    %105 = vmatpush1.msra.mxu0 %v69
    %106 = vmatprep.subr.mxu0 0.0
    %107 = vmatpush1.msra.mxu0 %v70
    %108 = vmatprep.subr.mxu0 0.0
    %109 = vmatpush1.msra.mxu0 %v71
    %110 = vmatprep.subr.mxu0 0.0
    %111 = vmatpush1.msra.mxu0 %v72
    %112 = vmatprep.subr.mxu0 0.0
    %113 = vmatpush1.msra.mxu0 %v73
    %114 = vmatprep.subr.mxu0 0.0
    %115 = vmatpush1.msra.mxu0 %v74
    %116 = vmatprep.subr.mxu0 0.0
    %117 = vmatpush1.msra.mxu0 %v75
    %118 = vmatprep.subr.mxu0 0.0
    %119 = vmatpush1.msra.mxu0 %v76
    %120 = vmatprep.subr.mxu0 0.0
    %121 = vmatpush1.msra.mxu0 0.0
    %122 = vmatprep.subr.mxu0 0.0
    %123 = vmatpush1.msra.mxu0 0.0
    %124 = vmatprep.subr.mxu0 0.0
    %125 = vmatpush1.msra.mxu0 0.0
    %126 = vmatprep.subr.mxu0 0.0
    %127 = vmatpush1.msra.mxu0 0.0
    %128 = vmatprep.subr.mxu0 0.0
    %129 = vmatpush1.msra.mxu0 0.0
    %130 = vmatprep.subr.mxu0 0.0
    %131 = vmatpush1.msra.mxu0 0.0
    %132 = vmatprep.subr.mxu0 0.0
    %133 = vmatpush1.msra.mxu0 0.0
    %134 = vmatprep.subr.mxu0 0.0
    %135 = vmatpush1.msra.mxu0 0.0
    %136 = vmatprep.subr.mxu0 0.0
    %137 = vmatpush1.msra.mxu0 0.0
    %138 = vmatprep.subr.mxu0 0.0
    %139 = vmatpush1.msra.mxu0 0.0
    %140 = vmatprep.subr.mxu0 0.0
    %141 = vmatpush1.msra.mxu0 0.0
    %142 = vmatprep.subr.mxu0 0.0
    %143 = vmatpush1.msra.mxu0 0.0
    %144 = vmatprep.subr.mxu0 0.0
    %145 = vmatpush1.msra.mxu0 0.0
    %146 = vmatprep.subr.mxu0 0.0
    %147 = vmatpush1.msra.mxu0 0.0
    %148 = vmatprep.subr.mxu0 0.0
    %149 = vmatpush1.msra.mxu0 0.0
    %150 = vmatprep.subr.mxu0 0.0
    %151 = vmatpush1.msra.mxu0 0.0
    %152 = vmatprep.subr.mxu0 0.0
    %153 = vmatpush1.msra.mxu0 0.0
    %154 = vmatprep.subr.mxu0 0.0
    %155 = vmatpush1.msra.mxu0 0.0
    %156 = vmatprep.subr.mxu0 0.0
    %157 = vmatpush1.msra.mxu0 0.0
    %158 = vmatprep.subr.mxu0 0.0
    %159 = vmatpush1.msra.mxu0 0.0
    %160 = vmatprep.subr.mxu0 0.0
    %161 = vmatpush1.msra.mxu0 0.0
    %162 = vmatprep.subr.mxu0 0.0
    %163 = vmatpush1.msra.mxu0 0.0
    %164 = vmatprep.subr.mxu0 0.0
    %165 = vmatpush1.msra.mxu0 0.0
    %166 = vmatprep.subr.mxu0 0.0
    %167 = vmatpush1.msra.mxu0 0.0
    %168 = vmatprep.mubr.f32.mxu0 0.0
    %169 = vmatmul.mubr.f32.gmra.mrb[0].mxu0 %v102
    %v170 = vpop.f32.mrb[0].mxu0
    %v171 = vadd.f32 %v98, %v170
    %v172 = vpop.f32.mrb[0].mxu0
    %173 = vdwg.mxu0
    %v174 = vmul.f32 %v171, 0.5
    %v175 = vtanh.pop %v174
    %v176 = vmul.f32 %v175, 0.5
    %v177 = vadd.f32 %v176, 0.5
    %179 = vrot.lane.b32.xlu0 %v89, 32
    %v180 = vpop.permute.xlu0 %179
    %v182 = vmul.f32 %v177, %v180
    %184 = vrot.lane.b32.xlu0 %v175, 64
    %v185 = vpop.permute.xlu0 %184
    %v187 = vmul.f32 %v177, %v185
    %189 = vrot.lane.b32.xlu0 %v187, 32
    %v190 = vpop.permute.xlu0 %189
    %v192 = vadd.f32 %v182, %v190
    %v193 = vtanh.pop %v192
    %195 = vrot.lane.b32.xlu0 %v193, 64
    %v196 = vpop.permute.xlu0 %195
    %v198 = vmul.f32 %v177, %v196
    %200 = vrot.lane.b32.xlu0 %v198, 32
    %v201 = vpop.permute.xlu0 %200
    %vm202 = vcmask 261120
    %v203 = vsel %vm202, %v201, 0
    %205 = vmatprep.subr.mxu0 0.0
    %206 = vmatpush1.msra.mxu0 %v78
    %207 = vmatprep.subr.mxu0 0.0
    %208 = vmatpush1.msra.mxu0 %v79
    %209 = vmatprep.subr.mxu0 0.0
    %210 = vmatpush1.msra.mxu0 %v80
    %211 = vmatprep.subr.mxu0 0.0
    %212 = vmatpush1.msra.mxu0 %v81
    %213 = vmatprep.subr.mxu0 0.0
    %214 = vmatpush1.msra.mxu0 0.0
    %215 = vmatprep.subr.mxu0 0.0
    %216 = vmatpush1.msra.mxu0 0.0
    %217 = vmatprep.subr.mxu0 0.0
    %218 = vmatpush1.msra.mxu0 0.0
    %219 = vmatprep.subr.mxu0 0.0
    %220 = vmatpush1.msra.mxu0 0.0
    %221 = vmatprep.subr.mxu0 0.0
    %222 = vmatpush1.msra.mxu0 0.0
    %223 = vmatprep.subr.mxu0 0.0
    %224 = vmatpush1.msra.mxu0 0.0
    %225 = vmatprep.subr.mxu0 0.0
    %226 = vmatpush1.msra.mxu0 0.0
    %227 = vmatprep.subr.mxu0 0.0
    %228 = vmatpush1.msra.mxu0 0.0
    %229 = vmatprep.subr.mxu0 0.0
    %230 = vmatpush1.msra.mxu0 0.0
    %231 = vmatprep.subr.mxu0 0.0
    %232 = vmatpush1.msra.mxu0 0.0
    %233 = vmatprep.subr.mxu0 0.0
    %234 = vmatpush1.msra.mxu0 0.0
    %235 = vmatprep.subr.mxu0 0.0
    %236 = vmatpush1.msra.mxu0 0.0
    %237 = vmatprep.subr.mxu0 0.0
    %238 = vmatpush1.msra.mxu0 0.0
    %239 = vmatprep.subr.mxu0 0.0
    %240 = vmatpush1.msra.mxu0 0.0
    %241 = vmatprep.subr.mxu0 0.0
    %242 = vmatpush1.msra.mxu0 0.0
    %243 = vmatprep.subr.mxu0 0.0
    %244 = vmatpush1.msra.mxu0 0.0
    %245 = vmatprep.subr.mxu0 0.0
    %246 = vmatpush1.msra.mxu0 0.0
    %247 = vmatprep.subr.mxu0 0.0
    %248 = vmatpush1.msra.mxu0 0.0
    %249 = vmatprep.subr.mxu0 0.0
    %250 = vmatpush1.msra.mxu0 0.0
    %251 = vmatprep.subr.mxu0 0.0
    %252 = vmatpush1.msra.mxu0 0.0
    %253 = vmatprep.subr.mxu0 0.0
    %254 = vmatpush1.msra.mxu0 0.0
    %255 = vmatprep.subr.mxu0 0.0
    %256 = vmatpush1.msra.mxu0 0.0
    %257 = vmatprep.subr.mxu0 0.0
    %258 = vmatpush1.msra.mxu0 0.0
    %259 = vmatprep.subr.mxu0 0.0
    %260 = vmatpush1.msra.mxu0 0.0
    %261 = vmatprep.subr.mxu0 0.0
    %262 = vmatpush1.msra.mxu0 0.0
    %263 = vmatprep.subr.mxu0 0.0
    %264 = vmatpush1.msra.mxu0 0.0
    %265 = vmatprep.subr.mxu0 0.0
    %266 = vmatpush1.msra.mxu0 0.0
    %267 = vmatprep.subr.mxu0 0.0
    %268 = vmatpush1.msra.mxu0 0.0
    %269 = vmatprep.mubr.f32.mxu0 0.0
    %270 = vmatmul.mubr.f32.gmra.mrb[0].mxu0 %v203
    %v271 = vpop.f32.mrb[0].mxu0
    %v272 = vadd.f32 0.0, %v271
    %v273 = vpop.f32.mrb[0].mxu0
    %274 = vdwg.mxu0
    %v275 = vtanh.pop %v272
    %v276 = vmul.f32 %v275, 2.5
    %277 = vst [vmem:[#allocation9] sm:$0x3] %v276
    %278 = vrot.lane.b32.xlu0 %v198, 64
    %v279 = vpop.permute.xlu0 %278
    %281 = vst.msk [vmem:[#allocation2] sm:$0x3] %vm87, %v279
    %s282 = scalar_lea.vmem [#allocation3], 2
    %v283 = vld [vmem:[%s282] sm:$0x3]
    %284 = vst.msk [vmem:[#allocation2] sm:$0x3] %vm91, %v283
    %v285 = vld [vmem:[#allocation2] sm:$0x3]
    %v287 = vsel %vm100, %v285, 0
    %289 = vmatprep.subr.mxu0 0.0
    %290 = vmatpush1.msra.mxu0 %v69
    %291 = vmatprep.subr.mxu0 0.0
    %292 = vmatpush1.msra.mxu0 %v70
    %293 = vmatprep.subr.mxu0 0.0
    %294 = vmatpush1.msra.mxu0 %v71
    %295 = vmatprep.subr.mxu0 0.0
    %296 = vmatpush1.msra.mxu0 %v72
    %297 = vmatprep.subr.mxu0 0.0
    %298 = vmatpush1.msra.mxu0 %v73
    %299 = vmatprep.subr.mxu0 0.0
    %300 = vmatpush1.msra.mxu0 %v74
    %301 = vmatprep.subr.mxu0 0.0
    %302 = vmatpush1.msra.mxu0 %v75
    %303 = vmatprep.subr.mxu0 0.0
    %304 = vmatpush1.msra.mxu0 %v76
    %305 = vmatprep.subr.mxu0 0.0
    %306 = vmatpush1.msra.mxu0 0.0
    %307 = vmatprep.subr.mxu0 0.0
    %308 = vmatpush1.msra.mxu0 0.0
    %309 = vmatprep.subr.mxu0 0.0
    %310 = vmatpush1.msra.mxu0 0.0
    %311 = vmatprep.subr.mxu0 0.0
    %312 = vmatpush1.msra.mxu0 0.0
    %313 = vmatprep.subr.mxu0 0.0
    %314 = vmatpush1.msra.mxu0 0.0
    %315 = vmatprep.subr.mxu0 0.0
    %316 = vmatpush1.msra.mxu0 0.0
    %317 = vmatprep.subr.mxu0 0.0
    %318 = vmatpush1.msra.mxu0 0.0
    %319 = vmatprep.subr.mxu0 0.0
    %320 = vmatpush1.msra.mxu0 0.0
    %321 = vmatprep.subr.mxu0 0.0
    %322 = vmatpush1.msra.mxu0 0.0
    %323 = vmatprep.subr.mxu0 0.0
    %324 = vmatpush1.msra.mxu0 0.0
    %325 = vmatprep.subr.mxu0 0.0
    %326 = vmatpush1.msra.mxu0 0.0
    %327 = vmatprep.subr.mxu0 0.0
    %328 = vmatpush1.msra.mxu0 0.0
    %329 = vmatprep.subr.mxu0 0.0
    %330 = vmatpush1.msra.mxu0 0.0
    %331 = vmatprep.subr.mxu0 0.0
    %332 = vmatpush1.msra.mxu0 0.0
    %333 = vmatprep.subr.mxu0 0.0
    %334 = vmatpush1.msra.mxu0 0.0
    %335 = vmatprep.subr.mxu0 0.0
    %336 = vmatpush1.msra.mxu0 0.0
    %337 = vmatprep.subr.mxu0 0.0
    %338 = vmatpush1.msra.mxu0 0.0
    %339 = vmatprep.subr.mxu0 0.0
    %340 = vmatpush1.msra.mxu0 0.0
    %341 = vmatprep.subr.mxu0 0.0
    %342 = vmatpush1.msra.mxu0 0.0
    %343 = vmatprep.subr.mxu0 0.0
    %344 = vmatpush1.msra.mxu0 0.0
    %345 = vmatprep.subr.mxu0 0.0
    %346 = vmatpush1.msra.mxu0 0.0
    %347 = vmatprep.subr.mxu0 0.0
    %348 = vmatpush1.msra.mxu0 0.0
    %349 = vmatprep.subr.mxu0 0.0
    %350 = vmatpush1.msra.mxu0 0.0
    %351 = vmatprep.subr.mxu0 0.0
    %352 = vmatpush1.msra.mxu0 0.0
    %353 = vmatprep.mubr.f32.mxu0 0.0
    %354 = vmatmul.mubr.f32.gmra.mrb[0].mxu0 %v287
    %v355 = vpop.f32.mrb[0].mxu0
    %v356 = vadd.f32 %v98, %v355
    %v357 = vpop.f32.mrb[0].mxu0
    %358 = vdwg.mxu0
    %v359 = vmul.f32 %v356, 0.5
    %v360 = vtanh.pop %v359
    %v361 = vmul.f32 %v360, 0.5
    %v362 = vadd.f32 %v361, 0.5
    %v363 = vmul.f32 %v362, %v192
    %365 = vrot.lane.b32.xlu0 %v360, 64
    %v366 = vpop.permute.xlu0 %365
    %v368 = vmul.f32 %v362, %v366
    %370 = vrot.lane.b32.xlu0 %v368, 32
    %v371 = vpop.permute.xlu0 %370
    %v373 = vadd.f32 %v363, %v371
    %v374 = vtanh.pop %v373
    %376 = vrot.lane.b32.xlu0 %v374, 64
    %v377 = vpop.permute.xlu0 %376
    %v379 = vmul.f32 %v362, %v377
    %381 = vrot.lane.b32.xlu0 %v379, 32
    %v382 = vpop.permute.xlu0 %381
    %v383 = vsel %vm202, %v382, 0
    %385 = vmatprep.subr.mxu0 0.0
    %386 = vmatpush1.msra.mxu0 %v78
    %387 = vmatprep.subr.mxu0 0.0
    %388 = vmatpush1.msra.mxu0 %v79
    %389 = vmatprep.subr.mxu0 0.0
    %390 = vmatpush1.msra.mxu0 %v80
    %391 = vmatprep.subr.mxu0 0.0
    %392 = vmatpush1.msra.mxu0 %v81
    %393 = vmatprep.subr.mxu0 0.0
    %394 = vmatpush1.msra.mxu0 0.0
    %395 = vmatprep.subr.mxu0 0.0
    %396 = vmatpush1.msra.mxu0 0.0
    %397 = vmatprep.subr.mxu0 0.0
    %398 = vmatpush1.msra.mxu0 0.0
    %399 = vmatprep.subr.mxu0 0.0
    %400 = vmatpush1.msra.mxu0 0.0
    %401 = vmatprep.subr.mxu0 0.0
    %402 = vmatpush1.msra.mxu0 0.0
    %403 = vmatprep.subr.mxu0 0.0
    %404 = vmatpush1.msra.mxu0 0.0
    %405 = vmatprep.subr.mxu0 0.0
    %406 = vmatpush1.msra.mxu0 0.0
    %407 = vmatprep.subr.mxu0 0.0
    %408 = vmatpush1.msra.mxu0 0.0
    %409 = vmatprep.subr.mxu0 0.0
    %410 = vmatpush1.msra.mxu0 0.0
    %411 = vmatprep.subr.mxu0 0.0
    %412 = vmatpush1.msra.mxu0 0.0
    %413 = vmatprep.subr.mxu0 0.0
    %414 = vmatpush1.msra.mxu0 0.0
    %415 = vmatprep.subr.mxu0 0.0
    %416 = vmatpush1.msra.mxu0 0.0
    %417 = vmatprep.subr.mxu0 0.0
    %418 = vmatpush1.msra.mxu0 0.0
    %419 = vmatprep.subr.mxu0 0.0
    %420 = vmatpush1.msra.mxu0 0.0
    %421 = vmatprep.subr.mxu0 0.0
    %422 = vmatpush1.msra.mxu0 0.0
    %423 = vmatprep.subr.mxu0 0.0
    %424 = vmatpush1.msra.mxu0 0.0
    %425 = vmatprep.subr.mxu0 0.0
    %426 = vmatpush1.msra.mxu0 0.0
    %427 = vmatprep.subr.mxu0 0.0
    %428 = vmatpush1.msra.mxu0 0.0
    %429 = vmatprep.subr.mxu0 0.0
    %430 = vmatpush1.msra.mxu0 0.0
    %431 = vmatprep.subr.mxu0 0.0
    %432 = vmatpush1.msra.mxu0 0.0
    %433 = vmatprep.subr.mxu0 0.0
    %434 = vmatpush1.msra.mxu0 0.0
    %435 = vmatprep.subr.mxu0 0.0
    %436 = vmatpush1.msra.mxu0 0.0
    %437 = vmatprep.subr.mxu0 0.0
    %438 = vmatpush1.msra.mxu0 0.0
    %439 = vmatprep.subr.mxu0 0.0
    %440 = vmatpush1.msra.mxu0 0.0
    %441 = vmatprep.subr.mxu0 0.0
    %442 = vmatpush1.msra.mxu0 0.0
    %443 = vmatprep.subr.mxu0 0.0
    %444 = vmatpush1.msra.mxu0 0.0
    %445 = vmatprep.subr.mxu0 0.0
    %446 = vmatpush1.msra.mxu0 0.0
    %447 = vmatprep.subr.mxu0 0.0
    %448 = vmatpush1.msra.mxu0 0.0
    %449 = vmatprep.mubr.f32.mxu0 0.0
    %450 = vmatmul.mubr.f32.gmra.mrb[0].mxu0 %v383
    %v451 = vpop.f32.mrb[0].mxu0
    %v452 = vadd.f32 0.0, %v451
    %v453 = vpop.f32.mrb[0].mxu0
    %454 = vdwg.mxu0
    %v455 = vtanh.pop %v452
    %v456 = vmul.f32 %v455, 2.5
    %s457 = scalar_lea.vmem [#allocation9], 2
    %458 = vst [vmem:[%s457] sm:$0x3] %v456
    %459 = vrot.lane.b32.xlu0 %v379, 64
    %v460 = vpop.permute.xlu0 %459
    %462 = vst.msk [vmem:[#allocation2] sm:$0x3] %vm87, %v460
    %s463 = scalar_lea.vmem [#allocation3], 4
    %v464 = vld [vmem:[%s463] sm:$0x3]
    %465 = vst.msk [vmem:[#allocation2] sm:$0x3] %vm91, %v464
    %v466 = vld [vmem:[#allocation2] sm:$0x3]
    %v468 = vsel %vm100, %v466, 0
    %470 = vmatprep.subr.mxu0 0.0
    %471 = vmatpush1.msra.mxu0 %v69
    %472 = vmatprep.subr.mxu0 0.0
    %473 = vmatpush1.msra.mxu0 %v70
    %474 = vmatprep.subr.mxu0 0.0
    %475 = vmatpush1.msra.mxu0 %v71
    %476 = vmatprep.subr.mxu0 0.0
    %477 = vmatpush1.msra.mxu0 %v72
    %478 = vmatprep.subr.mxu0 0.0
    %479 = vmatpush1.msra.mxu0 %v73
    %480 = vmatprep.subr.mxu0 0.0
    %481 = vmatpush1.msra.mxu0 %v74
    %482 = vmatprep.subr.mxu0 0.0
    %483 = vmatpush1.msra.mxu0 %v75
    %484 = vmatprep.subr.mxu0 0.0
    %485 = vmatpush1.msra.mxu0 %v76
    %486 = vmatprep.subr.mxu0 0.0
    %487 = vmatpush1.msra.mxu0 0.0
    %488 = vmatprep.subr.mxu0 0.0
    %489 = vmatpush1.msra.mxu0 0.0
    %490 = vmatprep.subr.mxu0 0.0
    %491 = vmatpush1.msra.mxu0 0.0
    %492 = vmatprep.subr.mxu0 0.0
    %493 = vmatpush1.msra.mxu0 0.0
    %494 = vmatprep.subr.mxu0 0.0
    %495 = vmatpush1.msra.mxu0 0.0
    %496 = vmatprep.subr.mxu0 0.0
    %497 = vmatpush1.msra.mxu0 0.0
    %498 = vmatprep.subr.mxu0 0.0
    %499 = vmatpush1.msra.mxu0 0.0
    %500 = vmatprep.subr.mxu0 0.0
    %501 = vmatpush1.msra.mxu0 0.0
    %502 = vmatprep.subr.mxu0 0.0
    %503 = vmatpush1.msra.mxu0 0.0
    %504 = vmatprep.subr.mxu0 0.0
    %505 = vmatpush1.msra.mxu0 0.0
    %506 = vmatprep.subr.mxu0 0.0
    %507 = vmatpush1.msra.mxu0 0.0
    %508 = vmatprep.subr.mxu0 0.0
    %509 = vmatpush1.msra.mxu0 0.0
    %510 = vmatprep.subr.mxu0 0.0
    %511 = vmatpush1.msra.mxu0 0.0
    %512 = vmatprep.subr.mxu0 0.0
    %513 = vmatpush1.msra.mxu0 0.0
    %514 = vmatprep.subr.mxu0 0.0
    %515 = vmatpush1.msra.mxu0 0.0
    %516 = vmatprep.subr.mxu0 0.0
    %517 = vmatpush1.msra.mxu0 0.0
    %518 = vmatprep.subr.mxu0 0.0
    %519 = vmatpush1.msra.mxu0 0.0
    %520 = vmatprep.subr.mxu0 0.0
    %521 = vmatpush1.msra.mxu0 0.0
    %522 = vmatprep.subr.mxu0 0.0
    %523 = vmatpush1.msra.mxu0 0.0
    %524 = vmatprep.subr.mxu0 0.0
    %525 = vmatpush1.msra.mxu0 0.0
    %526 = vmatprep.subr.mxu0 0.0
    %527 = vmatpush1.msra.mxu0 0.0
    %528 = vmatprep.subr.mxu0 0.0
    %529 = vmatpush1.msra.mxu0 0.0
    %530 = vmatprep.subr.mxu0 0.0
    %531 = vmatpush1.msra.mxu0 0.0
    %532 = vmatprep.subr.mxu0 0.0
    %533 = vmatpush1.msra.mxu0 0.0
    %534 = vmatprep.mubr.f32.mxu0 0.0
    %535 = vmatmul.mubr.f32.gmra.mrb[0].mxu0 %v468
    %v536 = vpop.f32.mrb[0].mxu0
    %v537 = vadd.f32 %v98, %v536
    %v538 = vpop.f32.mrb[0].mxu0
    %539 = vdwg.mxu0
    %v540 = vmul.f32 %v537, 0.5
    %v541 = vtanh.pop %v540
    %v542 = vmul.f32 %v541, 0.5
    %v543 = vadd.f32 %v542, 0.5
    %v544 = vmul.f32 %v543, %v373
    %546 = vrot.lane.b32.xlu0 %v541, 64
    %v547 = vpop.permute.xlu0 %546
    %v549 = vmul.f32 %v543, %v547
    %551 = vrot.lane.b32.xlu0 %v549, 32
    %v552 = vpop.permute.xlu0 %551
    %v554 = vadd.f32 %v544, %v552
    %v555 = vtanh.pop %v554
    %557 = vrot.lane.b32.xlu0 %v555, 64
    %v558 = vpop.permute.xlu0 %557
    %v560 = vmul.f32 %v543, %v558
    %562 = vrot.lane.b32.xlu0 %v560, 32
    %v563 = vpop.permute.xlu0 %562
    %v564 = vsel %vm202, %v563, 0
    %566 = vmatprep.subr.mxu0 0.0
    %567 = vmatpush1.msra.mxu0 %v78
    %568 = vmatprep.subr.mxu0 0.0
    %569 = vmatpush1.msra.mxu0 %v79
    %570 = vmatprep.subr.mxu0 0.0
    %571 = vmatpush1.msra.mxu0 %v80
    %572 = vmatprep.subr.mxu0 0.0
    %573 = vmatpush1.msra.mxu0 %v81
    %574 = vmatprep.subr.mxu0 0.0
    %575 = vmatpush1.msra.mxu0 0.0
    %576 = vmatprep.subr.mxu0 0.0
    %577 = vmatpush1.msra.mxu0 0.0
    %578 = vmatprep.subr.mxu0 0.0
    %579 = vmatpush1.msra.mxu0 0.0
    %580 = vmatprep.subr.mxu0 0.0
    %581 = vmatpush1.msra.mxu0 0.0
    %582 = vmatprep.subr.mxu0 0.0
    %583 = vmatpush1.msra.mxu0 0.0
    %584 = vmatprep.subr.mxu0 0.0
    %585 = vmatpush1.msra.mxu0 0.0
    %586 = vmatprep.subr.mxu0 0.0
    %587 = vmatpush1.msra.mxu0 0.0
    %588 = vmatprep.subr.mxu0 0.0
    %589 = vmatpush1.msra.mxu0 0.0
    %590 = vmatprep.subr.mxu0 0.0
    %591 = vmatpush1.msra.mxu0 0.0
    %592 = vmatprep.subr.mxu0 0.0
    %593 = vmatpush1.msra.mxu0 0.0
    %594 = vmatprep.subr.mxu0 0.0
    %595 = vmatpush1.msra.mxu0 0.0
    %596 = vmatprep.subr.mxu0 0.0
    %597 = vmatpush1.msra.mxu0 0.0
    %598 = vmatprep.subr.mxu0 0.0
    %599 = vmatpush1.msra.mxu0 0.0
    %600 = vmatprep.subr.mxu0 0.0
    %601 = vmatpush1.msra.mxu0 0.0
    %602 = vmatprep.subr.mxu0 0.0
    %603 = vmatpush1.msra.mxu0 0.0
    %604 = vmatprep.subr.mxu0 0.0
    %605 = vmatpush1.msra.mxu0 0.0
    %606 = vmatprep.subr.mxu0 0.0
    %607 = vmatpush1.msra.mxu0 0.0
    %608 = vmatprep.subr.mxu0 0.0
    %609 = vmatpush1.msra.mxu0 0.0
    %610 = vmatprep.subr.mxu0 0.0
    %611 = vmatpush1.msra.mxu0 0.0
    %612 = vmatprep.subr.mxu0 0.0
    %613 = vmatpush1.msra.mxu0 0.0
    %614 = vmatprep.subr.mxu0 0.0
    %615 = vmatpush1.msra.mxu0 0.0
    %616 = vmatprep.subr.mxu0 0.0
    %617 = vmatpush1.msra.mxu0 0.0
    %618 = vmatprep.subr.mxu0 0.0
    %619 = vmatpush1.msra.mxu0 0.0
    %620 = vmatprep.subr.mxu0 0.0
    %621 = vmatpush1.msra.mxu0 0.0
    %622 = vmatprep.subr.mxu0 0.0
    %623 = vmatpush1.msra.mxu0 0.0
    %624 = vmatprep.subr.mxu0 0.0
    %625 = vmatpush1.msra.mxu0 0.0
    %626 = vmatprep.subr.mxu0 0.0
    %627 = vmatpush1.msra.mxu0 0.0
    %628 = vmatprep.subr.mxu0 0.0
    %629 = vmatpush1.msra.mxu0 0.0
    %630 = vmatprep.mubr.f32.mxu0 0.0
    %631 = vmatmul.mubr.f32.gmra.mrb[0].mxu0 %v564
    %v632 = vpop.f32.mrb[0].mxu0
    %v633 = vadd.f32 0.0, %v632
    %v634 = vpop.f32.mrb[0].mxu0
    %635 = vdwg.mxu0
    %v636 = vtanh.pop %v633
    %v637 = vmul.f32 %v636, 2.5
    %s638 = scalar_lea.vmem [#allocation9], 4
    %639 = vst [vmem:[%s638] sm:$0x3] %v637
    %640 = vrot.lane.b32.xlu0 %v560, 64
    %v641 = vpop.permute.xlu0 %640
    %643 = vst.msk [vmem:[#allocation2] sm:$0x3] %vm87, %v641
    %s644 = scalar_lea.vmem [#allocation3], 6
    %v645 = vld [vmem:[%s644] sm:$0x3]
    %646 = vst.msk [vmem:[#allocation2] sm:$0x3] %vm91, %v645
    %v647 = vld [vmem:[#allocation2] sm:$0x3]
    %v649 = vsel %vm100, %v647, 0
    %651 = vmatprep.subr.mxu0 0.0
    %652 = vmatpush1.msra.mxu0 %v69
    %653 = vmatprep.subr.mxu0 0.0
    %654 = vmatpush1.msra.mxu0 %v70
    %655 = vmatprep.subr.mxu0 0.0
    %656 = vmatpush1.msra.mxu0 %v71
    %657 = vmatprep.subr.mxu0 0.0
    %658 = vmatpush1.msra.mxu0 %v72
    %659 = vmatprep.subr.mxu0 0.0
    %660 = vmatpush1.msra.mxu0 %v73
    %661 = vmatprep.subr.mxu0 0.0
    %662 = vmatpush1.msra.mxu0 %v74
    %663 = vmatprep.subr.mxu0 0.0
    %664 = vmatpush1.msra.mxu0 %v75
    %665 = vmatprep.subr.mxu0 0.0
    %666 = vmatpush1.msra.mxu0 %v76
    %667 = vmatprep.subr.mxu0 0.0
    %668 = vmatpush1.msra.mxu0 0.0
    %669 = vmatprep.subr.mxu0 0.0
    %670 = vmatpush1.msra.mxu0 0.0
    %671 = vmatprep.subr.mxu0 0.0
    %672 = vmatpush1.msra.mxu0 0.0
    %673 = vmatprep.subr.mxu0 0.0
    %674 = vmatpush1.msra.mxu0 0.0
    %675 = vmatprep.subr.mxu0 0.0
    %676 = vmatpush1.msra.mxu0 0.0
    %677 = vmatprep.subr.mxu0 0.0
    %678 = vmatpush1.msra.mxu0 0.0
    %679 = vmatprep.subr.mxu0 0.0
    %680 = vmatpush1.msra.mxu0 0.0
    %681 = vmatprep.subr.mxu0 0.0
    %682 = vmatpush1.msra.mxu0 0.0
    %683 = vmatprep.subr.mxu0 0.0
    %684 = vmatpush1.msra.mxu0 0.0
    %685 = vmatprep.subr.mxu0 0.0
    %686 = vmatpush1.msra.mxu0 0.0
    %687 = vmatprep.subr.mxu0 0.0
    %688 = vmatpush1.msra.mxu0 0.0
    %689 = vmatprep.subr.mxu0 0.0
    %690 = vmatpush1.msra.mxu0 0.0
    %691 = vmatprep.subr.mxu0 0.0
    %692 = vmatpush1.msra.mxu0 0.0
    %693 = vmatprep.subr.mxu0 0.0
    %694 = vmatpush1.msra.mxu0 0.0
    %695 = vmatprep.subr.mxu0 0.0
    %696 = vmatpush1.msra.mxu0 0.0
    %697 = vmatprep.subr.mxu0 0.0
    %698 = vmatpush1.msra.mxu0 0.0
    %699 = vmatprep.subr.mxu0 0.0
    %700 = vmatpush1.msra.mxu0 0.0
    %701 = vmatprep.subr.mxu0 0.0
    %702 = vmatpush1.msra.mxu0 0.0
    %703 = vmatprep.subr.mxu0 0.0
    %704 = vmatpush1.msra.mxu0 0.0
    %705 = vmatprep.subr.mxu0 0.0
    %706 = vmatpush1.msra.mxu0 0.0
    %707 = vmatprep.subr.mxu0 0.0
    %708 = vmatpush1.msra.mxu0 0.0
    %709 = vmatprep.subr.mxu0 0.0
    %710 = vmatpush1.msra.mxu0 0.0
    %711 = vmatprep.subr.mxu0 0.0
    %712 = vmatpush1.msra.mxu0 0.0
    %713 = vmatprep.subr.mxu0 0.0
    %714 = vmatpush1.msra.mxu0 0.0
    %715 = vmatprep.mubr.f32.mxu0 0.0
    %716 = vmatmul.mubr.f32.gmra.mrb[0].mxu0 %v649
    %v717 = vpop.f32.mrb[0].mxu0
    %v718 = vadd.f32 %v98, %v717
    %v719 = vpop.f32.mrb[0].mxu0
    %720 = vdwg.mxu0
    %v721 = vmul.f32 %v718, 0.5
    %v722 = vtanh.pop %v721
    %v723 = vmul.f32 %v722, 0.5
    %v724 = vadd.f32 %v723, 0.5
    %v725 = vmul.f32 %v724, %v554
    %727 = vrot.lane.b32.xlu0 %v722, 64
    %v728 = vpop.permute.xlu0 %727
    %v730 = vmul.f32 %v724, %v728
    %732 = vrot.lane.b32.xlu0 %v730, 32
    %v733 = vpop.permute.xlu0 %732
    %v735 = vadd.f32 %v725, %v733
    %v736 = vtanh.pop %v735
    %738 = vrot.lane.b32.xlu0 %v736, 64
    %v739 = vpop.permute.xlu0 %738
    %v741 = vmul.f32 %v724, %v739
    %743 = vrot.lane.b32.xlu0 %v741, 32
    %v744 = vpop.permute.xlu0 %743
    %v745 = vsel %vm202, %v744, 0
    %747 = vmatprep.subr.mxu0 0.0
    %748 = vmatpush1.msra.mxu0 %v78
    %749 = vmatprep.subr.mxu0 0.0
    %750 = vmatpush1.msra.mxu0 %v79
    %751 = vmatprep.subr.mxu0 0.0
    %752 = vmatpush1.msra.mxu0 %v80
    %753 = vmatprep.subr.mxu0 0.0
    %754 = vmatpush1.msra.mxu0 %v81
    %755 = vmatprep.subr.mxu0 0.0
    %756 = vmatpush1.msra.mxu0 0.0
    %757 = vmatprep.subr.mxu0 0.0
    %758 = vmatpush1.msra.mxu0 0.0
    %759 = vmatprep.subr.mxu0 0.0
    %760 = vmatpush1.msra.mxu0 0.0
    %761 = vmatprep.subr.mxu0 0.0
    %762 = vmatpush1.msra.mxu0 0.0
    %763 = vmatprep.subr.mxu0 0.0
    %764 = vmatpush1.msra.mxu0 0.0
    %765 = vmatprep.subr.mxu0 0.0
    %766 = vmatpush1.msra.mxu0 0.0
    %767 = vmatprep.subr.mxu0 0.0
    %768 = vmatpush1.msra.mxu0 0.0
    %769 = vmatprep.subr.mxu0 0.0
    %770 = vmatpush1.msra.mxu0 0.0
    %771 = vmatprep.subr.mxu0 0.0
    %772 = vmatpush1.msra.mxu0 0.0
    %773 = vmatprep.subr.mxu0 0.0
    %774 = vmatpush1.msra.mxu0 0.0
    %775 = vmatprep.subr.mxu0 0.0
    %776 = vmatpush1.msra.mxu0 0.0
    %777 = vmatprep.subr.mxu0 0.0
    %778 = vmatpush1.msra.mxu0 0.0
    %779 = vmatprep.subr.mxu0 0.0
    %780 = vmatpush1.msra.mxu0 0.0
    %781 = vmatprep.subr.mxu0 0.0
    %782 = vmatpush1.msra.mxu0 0.0
    %783 = vmatprep.subr.mxu0 0.0
    %784 = vmatpush1.msra.mxu0 0.0
    %785 = vmatprep.subr.mxu0 0.0
    %786 = vmatpush1.msra.mxu0 0.0
    %787 = vmatprep.subr.mxu0 0.0
    %788 = vmatpush1.msra.mxu0 0.0
    %789 = vmatprep.subr.mxu0 0.0
    %790 = vmatpush1.msra.mxu0 0.0
    %791 = vmatprep.subr.mxu0 0.0
    %792 = vmatpush1.msra.mxu0 0.0
    %793 = vmatprep.subr.mxu0 0.0
    %794 = vmatpush1.msra.mxu0 0.0
    %795 = vmatprep.subr.mxu0 0.0
    %796 = vmatpush1.msra.mxu0 0.0
    %797 = vmatprep.subr.mxu0 0.0
    %798 = vmatpush1.msra.mxu0 0.0
    %799 = vmatprep.subr.mxu0 0.0
    %800 = vmatpush1.msra.mxu0 0.0
    %801 = vmatprep.subr.mxu0 0.0
    %802 = vmatpush1.msra.mxu0 0.0
    %803 = vmatprep.subr.mxu0 0.0
    %804 = vmatpush1.msra.mxu0 0.0
    %805 = vmatprep.subr.mxu0 0.0
    %806 = vmatpush1.msra.mxu0 0.0
    %807 = vmatprep.subr.mxu0 0.0
    %808 = vmatpush1.msra.mxu0 0.0
    %809 = vmatprep.subr.mxu0 0.0
    %810 = vmatpush1.msra.mxu0 0.0
    %811 = vmatprep.mubr.f32.mxu0 0.0
    %812 = vmatmul.mubr.f32.gmra.mrb[0].mxu0 %v745
    %v813 = vpop.f32.mrb[0].mxu0
    %v814 = vadd.f32 0.0, %v813
    %v815 = vpop.f32.mrb[0].mxu0
    %816 = vdwg.mxu0
    %v817 = vtanh.pop %v814
    %v818 = vmul.f32 %v817, 2.5
    %s819 = scalar_lea.vmem [#allocation9], 6
    %820 = vst [vmem:[%s819] sm:$0x3] %v818
    %821 = vrot.lane.b32.xlu0 %v741, 64
    %v822 = vpop.permute.xlu0 %821
    %824 = vst.msk [vmem:[#allocation2] sm:$0x3] %vm87, %v822
    %s825 = scalar_lea.vmem [#allocation3], 8
    %v826 = vld [vmem:[%s825] sm:$0x3]
    %827 = vst.msk [vmem:[#allocation2] sm:$0x3] %vm91, %v826
    %v828 = vld [vmem:[#allocation2] sm:$0x3]
    %v830 = vsel %vm100, %v828, 0
    %832 = vmatprep.subr.mxu0 0.0
    %833 = vmatpush1.msra.mxu0 %v69
    %834 = vmatprep.subr.mxu0 0.0
    %835 = vmatpush1.msra.mxu0 %v70
    %836 = vmatprep.subr.mxu0 0.0
    %837 = vmatpush1.msra.mxu0 %v71
    %838 = vmatprep.subr.mxu0 0.0
    %839 = vmatpush1.msra.mxu0 %v72
    %840 = vmatprep.subr.mxu0 0.0
    %841 = vmatpush1.msra.mxu0 %v73
    %842 = vmatprep.subr.mxu0 0.0
    %843 = vmatpush1.msra.mxu0 %v74
    %844 = vmatprep.subr.mxu0 0.0
    %845 = vmatpush1.msra.mxu0 %v75
    %846 = vmatprep.subr.mxu0 0.0
    %847 = vmatpush1.msra.mxu0 %v76
    %848 = vmatprep.subr.mxu0 0.0
    %849 = vmatpush1.msra.mxu0 0.0
    %850 = vmatprep.subr.mxu0 0.0
    %851 = vmatpush1.msra.mxu0 0.0
    %852 = vmatprep.subr.mxu0 0.0
    %853 = vmatpush1.msra.mxu0 0.0
    %854 = vmatprep.subr.mxu0 0.0
    %855 = vmatpush1.msra.mxu0 0.0
    %856 = vmatprep.subr.mxu0 0.0
    %857 = vmatpush1.msra.mxu0 0.0
    %858 = vmatprep.subr.mxu0 0.0
    %859 = vmatpush1.msra.mxu0 0.0
    %860 = vmatprep.subr.mxu0 0.0
    %861 = vmatpush1.msra.mxu0 0.0
    %862 = vmatprep.subr.mxu0 0.0
    %863 = vmatpush1.msra.mxu0 0.0
    %864 = vmatprep.subr.mxu0 0.0
    %865 = vmatpush1.msra.mxu0 0.0
    %866 = vmatprep.subr.mxu0 0.0
    %867 = vmatpush1.msra.mxu0 0.0
    %868 = vmatprep.subr.mxu0 0.0
    %869 = vmatpush1.msra.mxu0 0.0
    %870 = vmatprep.subr.mxu0 0.0
    %871 = vmatpush1.msra.mxu0 0.0
    %872 = vmatprep.subr.mxu0 0.0
    %873 = vmatpush1.msra.mxu0 0.0
    %874 = vmatprep.subr.mxu0 0.0
    %875 = vmatpush1.msra.mxu0 0.0
    %876 = vmatprep.subr.mxu0 0.0
    %877 = vmatpush1.msra.mxu0 0.0
    %878 = vmatprep.subr.mxu0 0.0
    %879 = vmatpush1.msra.mxu0 0.0
    %880 = vmatprep.subr.mxu0 0.0
    %881 = vmatpush1.msra.mxu0 0.0
    %882 = vmatprep.subr.mxu0 0.0
    %883 = vmatpush1.msra.mxu0 0.0
    %884 = vmatprep.subr.mxu0 0.0
    %885 = vmatpush1.msra.mxu0 0.0
    %886 = vmatprep.subr.mxu0 0.0
    %887 = vmatpush1.msra.mxu0 0.0
    %888 = vmatprep.subr.mxu0 0.0
    %889 = vmatpush1.msra.mxu0 0.0
    %890 = vmatprep.subr.mxu0 0.0
    %891 = vmatpush1.msra.mxu0 0.0
    %892 = vmatprep.subr.mxu0 0.0
    %893 = vmatpush1.msra.mxu0 0.0
    %894 = vmatprep.subr.mxu0 0.0
    %895 = vmatpush1.msra.mxu0 0.0
    %896 = vmatprep.mubr.f32.mxu0 0.0
    %897 = vmatmul.mubr.f32.gmra.mrb[0].mxu0 %v830
    %v898 = vpop.f32.mrb[0].mxu0
    %v899 = vadd.f32 %v98, %v898
    %v900 = vpop.f32.mrb[0].mxu0
    %901 = vdwg.mxu0
    %v902 = vmul.f32 %v899, 0.5
    %v903 = vtanh.pop %v902
    %v904 = vmul.f32 %v903, 0.5
    %v905 = vadd.f32 %v904, 0.5
    %v906 = vmul.f32 %v905, %v735
    %908 = vrot.lane.b32.xlu0 %v903, 64
    %v909 = vpop.permute.xlu0 %908
    %v911 = vmul.f32 %v905, %v909
    %913 = vrot.lane.b32.xlu0 %v911, 32
    %v914 = vpop.permute.xlu0 %913
    %v916 = vadd.f32 %v906, %v914
    %v917 = vtanh.pop %v916
    %919 = vrot.lane.b32.xlu0 %v917, 64
    %v920 = vpop.permute.xlu0 %919
    %v922 = vmul.f32 %v905, %v920
    %924 = vrot.lane.b32.xlu0 %v922, 32
    %v925 = vpop.permute.xlu0 %924
    %v926 = vsel %vm202, %v925, 0
    %928 = vmatprep.subr.mxu0 0.0
    %929 = vmatpush1.msra.mxu0 %v78
    %930 = vmatprep.subr.mxu0 0.0
    %931 = vmatpush1.msra.mxu0 %v79
    %932 = vmatprep.subr.mxu0 0.0
    %933 = vmatpush1.msra.mxu0 %v80
    %934 = vmatprep.subr.mxu0 0.0
    %935 = vmatpush1.msra.mxu0 %v81
    %936 = vmatprep.subr.mxu0 0.0
    %937 = vmatpush1.msra.mxu0 0.0
    %938 = vmatprep.subr.mxu0 0.0
    %939 = vmatpush1.msra.mxu0 0.0
    %940 = vmatprep.subr.mxu0 0.0
    %941 = vmatpush1.msra.mxu0 0.0
    %942 = vmatprep.subr.mxu0 0.0
    %943 = vmatpush1.msra.mxu0 0.0
    %944 = vmatprep.subr.mxu0 0.0
    %945 = vmatpush1.msra.mxu0 0.0
    %946 = vmatprep.subr.mxu0 0.0
    %947 = vmatpush1.msra.mxu0 0.0
    %948 = vmatprep.subr.mxu0 0.0
    %949 = vmatpush1.msra.mxu0 0.0
    %950 = vmatprep.subr.mxu0 0.0
    %951 = vmatpush1.msra.mxu0 0.0
    %952 = vmatprep.subr.mxu0 0.0
    %953 = vmatpush1.msra.mxu0 0.0
    %954 = vmatprep.subr.mxu0 0.0
    %955 = vmatpush1.msra.mxu0 0.0
    %956 = vmatprep.subr.mxu0 0.0
    %957 = vmatpush1.msra.mxu0 0.0
    %958 = vmatprep.subr.mxu0 0.0
    %959 = vmatpush1.msra.mxu0 0.0
    %960 = vmatprep.subr.mxu0 0.0
    %961 = vmatpush1.msra.mxu0 0.0
    %962 = vmatprep.subr.mxu0 0.0
    %963 = vmatpush1.msra.mxu0 0.0
    %964 = vmatprep.subr.mxu0 0.0
    %965 = vmatpush1.msra.mxu0 0.0
    %966 = vmatprep.subr.mxu0 0.0
    %967 = vmatpush1.msra.mxu0 0.0
    %968 = vmatprep.subr.mxu0 0.0
    %969 = vmatpush1.msra.mxu0 0.0
    %970 = vmatprep.subr.mxu0 0.0
    %971 = vmatpush1.msra.mxu0 0.0
    %972 = vmatprep.subr.mxu0 0.0
    %973 = vmatpush1.msra.mxu0 0.0
    %974 = vmatprep.subr.mxu0 0.0
    %975 = vmatpush1.msra.mxu0 0.0
    %976 = vmatprep.subr.mxu0 0.0
    %977 = vmatpush1.msra.mxu0 0.0
    %978 = vmatprep.subr.mxu0 0.0
    %979 = vmatpush1.msra.mxu0 0.0
    %980 = vmatprep.subr.mxu0 0.0
    %981 = vmatpush1.msra.mxu0 0.0
    %982 = vmatprep.subr.mxu0 0.0
    %983 = vmatpush1.msra.mxu0 0.0
    %984 = vmatprep.subr.mxu0 0.0
    %985 = vmatpush1.msra.mxu0 0.0
    %986 = vmatprep.subr.mxu0 0.0
    %987 = vmatpush1.msra.mxu0 0.0
    %988 = vmatprep.subr.mxu0 0.0
    %989 = vmatpush1.msra.mxu0 0.0
    %990 = vmatprep.subr.mxu0 0.0
    %991 = vmatpush1.msra.mxu0 0.0
    %992 = vmatprep.mubr.f32.mxu0 0.0
    %993 = vmatmul.mubr.f32.gmra.mrb[0].mxu0 %v926
    %v994 = vpop.f32.mrb[0].mxu0
    %v995 = vadd.f32 0.0, %v994
    %v996 = vpop.f32.mrb[0].mxu0
    %997 = vdwg.mxu0
    %v998 = vtanh.pop %v995
    %v999 = vmul.f32 %v998, 2.5
    %s1000 = scalar_lea.vmem [#allocation9], 8
    %1001 = vst [vmem:[%s1000] sm:$0x3] %v999
    %1002 = vrot.lane.b32.xlu0 %v922, 64
    %v1003 = vpop.permute.xlu0 %1002
    %1005 = vst.msk [vmem:[#allocation2] sm:$0x3] %vm87, %v1003
    %1007 = vst.msk [vmem:[#allocation10] sm:$0x3] %vm91, %v925
    %1009 = vrot.lane.b32.xlu0 %v916, 96
    %v1010 = vpop.permute.xlu0 %1009
    %1012 = vst.msk [vmem:[#allocation12] sm:$0x3] %vm91, %v1010
    // Predicated region
    $region38: #{tpu_custom_call.1} parent=1 // pred_check
      _
    $region39: #{tpu_custom_call.1} parent=1 // pred_check_branch
      %1014 = sbr.rel (0) target = $region41
    $region40: #{tpu_custom_call.1} parent=1 // pred_region
      %s1016 = ssub.s32 160, 160
      %1017 = vsyncadd [#allocation5], %s1016
      %s1018 = sshll.u32 [#allocation9], 4
      %s1019 = int_to_ptr.vmem [resolvable:$true] %s1018
      %1024 = dma.vmem_to_hbm [thread:$0]  %s1019, 160, %s6, [#allocation5], 32, 32, 2
    $region41: #{tpu_custom_call.1} parent=1 // pred_fallthru
      _
    // Predicated region
    $region42: #{tpu_custom_call.1} parent=1 // pred_check
      _
    $region43: #{tpu_custom_call.1} parent=1 // pred_check_branch
      %1026 = sbr.rel (0) target = $region45
    $region44: #{tpu_custom_call.1} parent=1 // pred_region
      %s1028 = ssub.s32 32, 32
      %1029 = vsyncadd [#allocation11], %s1028
      %s1031 = sshll.u32 [#allocation10], 4
      %s1032 = int_to_ptr.vmem [resolvable:$true] %s1031
      %1034 = dma.vmem_to_hbm [thread:$0]  %s1032, 32, %s7, [#allocation11]
    $region45: #{tpu_custom_call.1} parent=1 // pred_fallthru
      _
    // Predicated region
    $region46: #{tpu_custom_call.1} parent=1 // pred_check
      _
    $region47: #{tpu_custom_call.1} parent=1 // pred_check_branch
      %1036 = sbr.rel (0) target = $region49
    $region48: #{tpu_custom_call.1} parent=1 // pred_region
      %s1038 = ssub.s32 32, 32
      %1039 = vsyncadd [#allocation11], %s1038
      %s1041 = sshll.u32 [#allocation12], 4
      %s1042 = int_to_ptr.vmem [resolvable:$true] %s1041
      %1044 = dma.vmem_to_hbm [thread:$0]  %s1042, 32, %s8, [#allocation11]
    $region49: #{tpu_custom_call.1} parent=1 // pred_fallthru
      _
    // Predicated region
    $region50: #{tpu_custom_call.1} parent=1 // pred_check
      _
    $region51: #{tpu_custom_call.1} parent=1 // pred_check_branch
      %1046 = sbr.rel (0) target = $region53
    $region52: #{tpu_custom_call.1} parent=1 // pred_region
      %1047 = dma.done [#allocation5], 160
    $region53: #{tpu_custom_call.1} parent=1 // pred_fallthru
      _
    // Predicated region
    $region54: #{tpu_custom_call.1} parent=1 // pred_check
      _
    $region55: #{tpu_custom_call.1} parent=1 // pred_check_branch
      %1049 = sbr.rel (0) target = $region57
    $region56: #{tpu_custom_call.1} parent=1 // pred_region
      %1050 = dma.done [#allocation11], 32
    $region57: #{tpu_custom_call.1} parent=1 // pred_fallthru
      _
    // Predicated region
    $region58: #{tpu_custom_call.1} parent=1 // pred_check
      _
    $region59: #{tpu_custom_call.1} parent=1 // pred_check_branch
      %1052 = sbr.rel (0) target = $region61
    $region60: #{tpu_custom_call.1} parent=1 // pred_region
      %1053 = dma.done [#allocation11], 32
    $region61: #{tpu_custom_call.1} parent=1 // pred_fallthru
      _
    %1054 = vsyncpa [#allocation4], 1
    %1055 = vsyncpa [#allocation7], 1
    %1056 = vsyncpa [#allocation5], 1
    %1057 = vsyncpa [#allocation11], 1

</llo_original>
